<compile_context>
chip_gen: v7x
topology: tpu7x:2x2x1
jax: 0.10.0
libtpu: 0.0.40
codegen_flags: <defaults>
</compile_context>

<pallas_src>
from functools import partial

import jax
import jax.numpy as jnp
from jax.experimental import pallas as pl
from jax.experimental.pallas import tpu as pltpu

LN_EPS = 1e-5
NEG_INF = -1e9


# ---------------------------------------------------------------------------
# helpers
# ---------------------------------------------------------------------------

def _round_up(x, m):
    return ((x + m - 1) // m) * m


def _nbytes(*arrays):
    return int(sum(a.size * a.dtype.itemsize for a in arrays))


def _vmem_capacity_bytes():
    """Generation-aware VMEM capacity (falls back to the smallest, v7x-sized)."""
    try:
        info = pltpu.get_tpu_info()
        for name in ("vmem_capacity_bytes", "vmem_size_bytes", "vmem_bytes"):
            cap = getattr(info, name, None)
            if cap:
                return int(cap)
    except Exception:
        pass
    return 64 << 20


def _vmem_limit_bytes(resident_bytes):
    cap = _vmem_capacity_bytes()
    ceiling = int(0.85 * cap)          # headroom for compiler-internal scratch
    return int(min(ceiling, max(32 << 20, 2 * int(resident_bytes))))


_BUFFERED_OK = None


def _buffered_supported():
    """One-time capability probe for pl.Buffered(1) single-buffered operands."""
    global _BUFFERED_OK
    if _BUFFERED_OK is None:
        try:
            def _copy(x_ref, o_ref):
                o_ref[...] = x_ref[...]
            x = jnp.zeros((8, 128), jnp.float32)
            out = pl.pallas_call(
                _copy,
                out_shape=jax.ShapeDtypeStruct((8, 128), jnp.float32),
                grid=(1,),
                in_specs=[pl.BlockSpec((8, 128), lambda i: (0, 0),
                                       pipeline_mode=pl.Buffered(1))],
                out_specs=pl.BlockSpec((8, 128), lambda i: (0, 0)),
            )(x)
            jax.block_until_ready(out)
            _BUFFERED_OK = True
        except Exception:
            _BUFFERED_OK = False
    return _BUFFERED_OK


def _const_spec(shape):
    """BlockSpec for a grid-invariant operand (weights / biases / LN scales)."""
    index_map = lambda *_: (0,) * len(shape)
    if _buffered_supported():
        return pl.BlockSpec(shape, index_map, pipeline_mode=pl.Buffered(1))
    return pl.BlockSpec(shape, index_map)


def _layer_norm_f32(z, gamma, beta):
    mean = jnp.mean(z, axis=-1, keepdims=True)
    cent = z - mean
    var = jnp.mean(cent * cent, axis=-1, keepdims=True)
    return cent * jax.lax.rsqrt(var + LN_EPS) * gamma + beta


# ---------------------------------------------------------------------------
# FeedForward kernel  (grid = (row tiles, filter panels))
# ---------------------------------------------------------------------------

def ffn_kernel(x_ref, w1_ref, b1_ref, w2_ref, b2_ref, g_ref, beta_ref,
               o_ref, acc_ref):
    f = pl.program_id(1)

    @pl.when(f == 0)
    def _():
        acc_ref[...] = jnp.zeros_like(acc_ref)

    x = x_ref[...]                                         # native dtype -> MXU
    h = jnp.dot(x, w1_ref[...], preferred_element_type=jnp.float32)
    h = jnp.maximum(h + b1_ref[...].astype(jnp.float32), 0.0)
    acc_ref[...] += jnp.dot(h.astype(w2_ref.dtype), w2_ref[...],
                            preferred_element_type=jnp.float32)

    @pl.when(f == pl.num_programs(1) - 1)
    def _():
        # TODO(synk): dropout is eval-mode identity (training-time RNG dropout not implemented).
        y = acc_ref[...] + b2_ref[...].astype(jnp.float32)
        z = y + x.astype(jnp.float32)
        out = _layer_norm_f32(z, g_ref[...].astype(jnp.float32),
                              beta_ref[...].astype(jnp.float32))
        o_ref[...] = out.astype(o_ref.dtype)


def feed_forward(x, w1, b1, w2, b2, gamma, beta, *, row_tile=None, f_tile=None):
    """x: [batch, seq, hidden] -> [batch, seq, hidden]."""
    B, S, H = x.shape
    F = w1.shape[1]
    M = B * S
    x2 = x.reshape(M, H)
    cap = _vmem_capacity_bytes()
    itemsize = x.dtype.itemsize
    w_itemsize = w1.dtype.itemsize

    # Row tile: bigger on 128-MiB-VMEM parts (v5e/v6e), moderate on v7x.
    if row_tile is None:
        row_tile = 512 if cap >= (96 << 20) else 256
    tm = min(int(row_tile), _round_up(M, 8))
    m_pad = _round_up(M, tm)
    if m_pad != M:
        x2 = jnp.pad(x2, ((0, m_pad - M), (0, 0)))

    # Filter tile: stream w1 column / w2 row panels when weights exceed the budget.
    if f_tile is None:
        weight_budget = int(0.35 * cap)
        if 2 * H * F * w_itemsize <= weight_budget:
            f_tile = F
        else:
            f_tile = max(128, ((weight_budget // (4 * H * w_itemsize)) // 128) * 128)
    tf = min(int(f_tile), F)
    f_pad = _round_up(F, tf)
    if f_pad != F:  # zero-pad the filter axis: relu(x@0 + 0) = 0 contributes nothing
        w1 = jnp.pad(w1, ((0, 0), (0, f_pad - F)))
        b1 = jnp.pad(b1, ((0, 0), (0, f_pad - F)))
        w2 = jnp.pad(w2, ((0, f_pad - F), (0, 0)))
    n_f = f_pad // tf

    if n_f == 1:   # weights are grid-invariant -> single VMEM copy
        w1_spec = _const_spec((H, tf))
        b1_spec = _const_spec((1, tf))
        w2_spec = _const_spec((tf, H))
    else:
        w1_spec = pl.BlockSpec((H, tf), lambda i, f: (0, f))
        b1_spec = pl.BlockSpec((1, tf), lambda i, f: (0, f))
        w2_spec = pl.BlockSpec((tf, H), lambda i, f: (f, 0))

    resident = ((2 * H * tf + tf + 3 * H) * w_itemsize * 2     # weight panels
                + 2 * 2 * tm * H * itemsize                     # in/out tiles, dbl-buffered
                + 4 * tm * (tf + 2 * H))                        # f32 intermediates + acc
    vmem_limit = _vmem_limit_bytes(resident)

    cost = pl.CostEstimate(
        flops=int(4 * m_pad * H * f_pad),
        transcendentals=0,
        bytes_accessed=int(_nbytes(x2, w1, w2) + m_pad * H * itemsize),
    )

    out2 = pl.pallas_call(
        ffn_kernel,
        out_shape=jax.ShapeDtypeStruct((m_pad, H), x.dtype),
        grid_spec=pltpu.PrefetchScalarGridSpec(
            num_scalar_prefetch=0,
            grid=(m_pad // tm, n_f),
            in_specs=[
                pl.BlockSpec((tm, H), lambda i, f: (i, 0)),    # x rows
                w1_spec, b1_spec, w2_spec,
                _const_spec((1, H)),                           # b2
                _const_spec((1, H)),                           # ln gamma
                _const_spec((1, H)),                           # ln beta
            ],
            out_specs=pl.BlockSpec((tm, H), lambda i, f: (i, 0)),
            scratch_shapes=[pltpu.VMEM((tm, H), jnp.float32)], # f32 accumulator
        ),
        compiler_params=pltpu.CompilerParams(
            dimension_semantics=("parallel", "arbitrary"),
            vmem_limit_bytes=vmem_limit),
        cost_estimate=cost,
    )(x2, w1, b1, w2, b2, gamma, beta)

    return out2[:M].reshape(B, S, H)


# ---------------------------------------------------------------------------
# MultiHeadAttention kernel  (grid = (batch, query tiles))
#   K/V share an input tensor (true for both MHA calls in DecoderLayer), so their
#   projection is fused into one (H, 2H) matmul, done once per batch element and
#   cached in VMEM scratch across the query-tile axis.
# ---------------------------------------------------------------------------

def mha_kernel(q_ref, kv_ref, mask_ref,
               wq_ref, bq_ref, wkv_ref, bkv_ref, wo_ref, bo_ref,
               g_ref, beta_ref, *rest,
               num_heads, head_dim, with_attn):
    if with_attn:
        o_ref, attn_ref, q_scr, k_scr, v_scr, ctx_scr = rest
    else:
        o_ref, q_scr, k_scr, v_scr, ctx_scr = rest
        attn_ref = None

    qi = pl.program_id(1)
    H = num_heads * head_dim
    dot_dtype = q_ref.dtype

    # ---- project K and V once per batch element (fused N=2H MXU pass) ----
    @pl.when(qi == 0)
    def _():
        kv = jnp.dot(kv_ref[0], wkv_ref[...], preferred_element_type=jnp.float32)
        kv = kv + bkv_ref[...].astype(jnp.float32)
        for h in range(num_heads):                    # cheap slice-stores, once / batch
            lo = h * head_dim
            k_scr[h] = kv[:, lo:lo + head_dim].astype(dot_dtype)
            v_scr[h] = kv[:, H + lo:H + lo + head_dim].astype(dot_dtype)

    x_q = q_ref[0]                                    # (tq, H) residual source

    # ---- Q projection; 1/sqrt(d_k) folded into q; split into heads once ----
    scale = jnp.float32(1.0 / (head_dim ** 0.5))
    q = jnp.dot(x_q, wq_ref[...], preferred_element_type=jnp.float32)
    q = (q + bq_ref[...].astype(jnp.float32)) * scale
    for h in range(num_heads):
        lo = h * head_dim
        q_scr[h] = q[:, lo:lo + head_dim].astype(dot_dtype)

    qh = q_scr[...]                                   # (nh, tq, hd)
    k = k_scr[...]                                    # (nh, Sk, hd)
    v = v_scr[...]                                    # (nh, Sk, hd)

    # ---- batched-head scores + softmax ----
    scores = jnp.einsum("hqd,hkd->hqk", qh, k,
                        preferred_element_type=jnp.float32)    # (nh, tq, Sk)
    masked = mask_ref[0] == 0                                  # (tq, Sk), computed once
    scores = jnp.where(masked[None, :, :], jnp.float32(NEG_INF), scores)

    smax = jnp.max(scores, axis=-1, keepdims=True)
    p = jnp.exp(scores - smax)
    denom = jnp.sum(p, axis=-1, keepdims=True)
    attn = p * pl.reciprocal(denom, approx=True)               # EUP reciprocal
    # TODO(synk): attention / output dropout is eval-mode identity.
    if with_attn:
        attn_ref[0] = attn.astype(attn_ref.dtype)

    # ---- context, assembled to (tq, H), then ONE full-K output projection ----
    ctx = jnp.einsum("hqk,hkd->hqd", attn.astype(dot_dtype), v,
                     preferred_element_type=jnp.float32)       # (nh, tq, hd)
    for h in range(num_heads):
        lo = h * head_dim
        ctx_scr[:, lo:lo + head_dim] = ctx[h]
    y = jnp.dot(ctx_scr[...].astype(wo_ref.dtype), wo_ref[...],
                preferred_element_type=jnp.float32)
    y = y + bo_ref[...].astype(jnp.float32)

    z = y + x_q.astype(jnp.float32)
    out = _layer_norm_f32(z, g_ref[...].astype(jnp.float32),
                          beta_ref[...].astype(jnp.float32))
    o_ref[0] = out.astype(o_ref.dtype)


def multi_head_attention(q_in, kv_in, mask, p, *, num_heads, q_tile=None,
                         return_attention=True):
    """q_in: [B, Sq, H]; kv_in: [B, Sk, H] (shared K/V source, as in DecoderLayer);
    mask: [B, Sq, Sk] with 1 = attend, 0 = masked."""
    B, Sq, H = q_in.shape
    Sk = kv_in.shape[1]
    assert H % num_heads == 0
    head_dim = H // num_heads
    dt = q_in.dtype
    itemsize = dt.itemsize

    # fused K/V projection weights: one lane-dense N=2H MXU pass
    wkv = jnp.concatenate([p["wk"], p["wv"]], axis=1)          # (H, 2H)
    bkv = jnp.concatenate([p["bk"], p["bv"]], axis=1)          # (1, 2H)

    # query-row tiling bounds VMEM (scores / attn blocks) and pipeline granularity
    if q_tile is None:
        q_tile = 256
    tq = min(int(q_tile), _round_up(Sq, 8))
    sq_pad = _round_up(Sq, tq)
    q2 = q_in
    mask2 = mask.astype(dt)               # mask DMA in the activation dtype
    if sq_pad != Sq:
        q2 = jnp.pad(q2, ((0, 0), (0, sq_pad - Sq), (0, 0)))
        mask2 = jnp.pad(mask2, ((0, 0), (0, sq_pad - Sq), (0, 0)))
    n_q = sq_pad // tq

    w_itemsize = p["wq"].dtype.itemsize
    weight_bytes = (4 * H * H + 6 * H) * w_itemsize
    io_bytes = 2 * (2 * tq * H + Sk * H + tq * Sk) * itemsize
    attn_bytes = 2 * num_heads * tq * Sk * itemsize if return_attention else 0
    scratch_bytes = ((2 * Sk + tq) * num_heads * head_dim) * itemsize + 4 * tq * H
    inter_bytes = 4 * (2 * num_heads * tq * Sk + 2 * Sk * H + 2 * tq * H)
    vmem_limit = _vmem_limit_bytes(weight_bytes + io_bytes + attn_bytes
                                   + scratch_bytes + inter_bytes)

    cost = pl.CostEstimate(
        flops=int(B * (4 * sq_pad * H * H + 4 * Sk * H * H + 4 * sq_pad * Sk * H)),
        transcendentals=int(B * num_heads * sq_pad * Sk),
        bytes_accessed=int(_nbytes(q2, kv_in, mask2) + weight_bytes
                           + B * sq_pad * H * itemsize + B * attn_bytes // 2),
    )

    if return_attention:
        out_shape = (jax.ShapeDtypeStruct((B, sq_pad, H), dt),
                     jax.ShapeDtypeStruct((B, num_heads, sq_pad, Sk), dt))
        out_specs = (pl.BlockSpec((1, tq, H), lambda b, qi: (b, qi, 0)),
                     pl.BlockSpec((1, num_heads, tq, Sk),
                                  lambda b, qi: (b, 0, qi, 0)))
    else:
        out_shape = jax.ShapeDtypeStruct((B, sq_pad, H), dt)
        out_specs = pl.BlockSpec((1, tq, H), lambda b, qi: (b, qi, 0))

    results = pl.pallas_call(
        partial(mha_kernel, num_heads=num_heads, head_dim=head_dim,
                with_attn=return_attention),
        out_shape=out_shape,
        grid_spec=pltpu.PrefetchScalarGridSpec(
            num_scalar_prefetch=0,
            grid=(B, n_q),
            in_specs=[
                pl.BlockSpec((1, tq, H), lambda b, qi: (b, qi, 0)),    # q rows
                pl.BlockSpec((1, Sk, H), lambda b, qi: (b, 0, 0)),     # shared K/V src
                pl.BlockSpec((1, tq, Sk), lambda b, qi: (b, qi, 0)),   # mask rows
                _const_spec((H, H)), _const_spec((1, H)),              # wq, bq
                _const_spec((H, 2 * H)), _const_spec((1, 2 * H)),      # wkv, bkv
                _const_spec((H, H)), _const_spec((1, H)),              # wo, bo
                _const_spec((1, H)), _const_spec((1, H)),              # gamma, beta
            ],
            out_specs=out_specs,
            scratch_shapes=[
                pltpu.VMEM((num_heads, tq, head_dim), dt),    # q split into heads
                pltpu.VMEM((num_heads, Sk, head_dim), dt),    # projected K (per batch)
                pltpu.VMEM((num_heads, Sk, head_dim), dt),    # projected V (per batch)
                pltpu.VMEM((tq, H), jnp.float32),             # assembled context
            ],
        ),
        compiler_params=pltpu.CompilerParams(
            # batch axis can be sharded across v7x's two TensorCores; q-tile axis is
            # "arbitrary" because projected K/V are carried in scratch across it.
            dimension_semantics=("parallel", "arbitrary"),
            vmem_limit_bytes=vmem_limit),
        cost_estimate=cost,
    )(q2, kv_in, mask2, p["wq"], p["bq"], wkv, bkv, p["wo"], p["bo"],
      p["gamma"], p["beta"])

    if return_attention:
        out, attn = results
        return out[:, :Sq], attn[:, :, :Sq]
    return results[:, :Sq], None


# ---------------------------------------------------------------------------
# DecoderLayer forward
# ---------------------------------------------------------------------------

def decoder_layer(x, encoder_output, source_mask, target_mask, params, *,
                  num_heads, q_tile=None, row_tile=None):
    x, attn1 = multi_head_attention(x, x, target_mask, params["attn1"],
                                    num_heads=num_heads, q_tile=q_tile)
    x, attn2 = multi_head_attention(x, encoder_output, source_mask, params["attn2"],
                                    num_heads=num_heads, q_tile=q_tile)
    x = feed_forward(x, *params["ffn"], row_tile=row_tile)
    return x, attn1, attn2


# ---------------------------------------------------------------------------
# pure-JAX reference
# ---------------------------------------------------------------------------

def _layer_norm_ref(z, gamma, beta):
    mean = jnp.mean(z, axis=-1, keepdims=True)
    var = jnp.mean((z - mean) ** 2, axis=-1, keepdims=True)
    return (z - mean) * jax.lax.rsqrt(var + LN_EPS) * gamma + beta


def reference_mha(q_in, kv_in, mask, p, num_heads):
    B, Sq, H = q_in.shape
    hd = H // num_heads
    q = q_in @ p["wq"] + p["bq"][0]
    k = kv_in @ p["wk"] + p["bk"][0]
    v = kv_in @ p["wv"] + p["bv"][0]
    split = lambda t: t.reshape(B, -1, num_heads, hd).transpose(0, 2, 1, 3)
    qh, kh, vh = split(q), split(k), split(v)
    scores = jnp.einsum("bhid,bhjd->bhij", qh, kh) / jnp.sqrt(jnp.float32(hd))
    scores = jnp.where(mask[:, None] == 0, NEG_INF, scores)
    attn = jax.nn.softmax(scores, axis=-1)
    ctx = jnp.einsum("bhij,bhjd->bhid", attn, vh)
    ctx = ctx.transpose(0, 2, 1, 3).reshape(B, Sq, H)
    y = ctx @ p["wo"] + p["bo"][0]
    return _layer_norm_ref(y + q_in, p["gamma"][0], p["beta"][0]), attn


def reference_ffn(x, w1, b1, w2, b2, gamma, beta):
    h = jnp.maximum(x @ w1 + b1[0], 0.0)
    y = h @ w2 + b2[0]
    return _layer_norm_ref(y + x, gamma[0], beta[0])


def reference_decoder_layer(x, enc, source_mask, target_mask, params, num_heads):
    x1, a1 = reference_mha(x, x, target_mask, params["attn1"], num_heads)
    x2, a2 = reference_mha(x1, enc, source_mask, params["attn2"], num_heads)
    x3 = reference_ffn(x2, *params["ffn"])
    return x3, a1, a2


# ---------------------------------------------------------------------------
# demo / self-test
# ---------------------------------------------------------------------------

if __name__ == "__main__":
    batch, seq, seq_enc, hidden, filt, heads = 2, 8, 8, 32, 64, 4

    key = jax.random.PRNGKey(0)
    k_x, k_enc, k_a1, k_a2, k_ffn = jax.random.split(key, 5)

    x = jax.random.normal(k_x, (batch, seq, hidden), jnp.float32)
    enc = jax.random.normal(k_enc, (batch, seq_enc, hidden), jnp.float32)

    # masks: 1 = attend, 0 = masked (broadcast over heads, as in the torch code)
    target_mask = jnp.broadcast_to(jnp.tril(jnp.ones((seq, seq), jnp.float32)),
                                   (batch, seq, seq))
    source_mask = jnp.ones((batch, seq, seq_enc), jnp.float32)
    source_mask = source_mask.at[1, :, seq_enc - 2:].set(0.0)   # pad last 2 enc tokens

    def init_linear(k, fan_in, fan_out):
        kw, kb = jax.random.split(k)
        lim = 1.0 / (fan_in ** 0.5)
        w = jax.random.uniform(kw, (fan_in, fan_out), jnp.float32, -lim, lim)  # [in, out]
        b = jax.random.uniform(kb, (1, fan_out), jnp.float32, -lim, lim)
        return w, b

    def init_attn(k):
        kq, kk, kv, ko = jax.random.split(k, 4)
        wq, bq = init_linear(kq, hidden, hidden)
        wk, bk = init_linear(kk, hidden, hidden)
        wv, bv = init_linear(kv, hidden, hidden)
        wo, bo = init_linear(ko, hidden, hidden)
        return dict(wq=wq, bq=bq, wk=wk, bk=bk, wv=wv, bv=bv, wo=wo, bo=bo,
                    gamma=jnp.ones((1, hidden), jnp.float32),
                    beta=jnp.zeros((1, hidden), jnp.float32))

    kf1, kf2 = jax.random.split(k_ffn)
    w1, b1 = init_linear(kf1, hidden, filt)
    w2, b2 = init_linear(kf2, filt, hidden)
    params = dict(
        attn1=init_attn(k_a1),
        attn2=init_attn(k_a2),
        ffn=(w1, b1, w2, b2,
             jnp.ones((1, hidden), jnp.float32), jnp.zeros((1, hidden), jnp.float32)),
    )

    out, attn1, attn2 = jax.block_until_ready(
        decoder_layer(x, enc, source_mask, target_mask, params, num_heads=heads))

    ref_out, ref_a1, ref_a2 = reference_decoder_layer(
        x, enc, source_mask, target_mask, params, heads)

    assert out.shape == (batch, seq, hidden)
    assert attn1.shape == (batch, heads, seq, seq)
    assert attn2.shape == (batch, heads, seq, seq_enc)
    # tolerance slightly relaxed vs pure-f32 because the softmax denominator uses the
    # EUP approximate reciprocal (pl.reciprocal(approx=True)).
    assert jnp.allclose(out, ref_out, atol=2e-3, rtol=2e-3), "output mismatch vs JAX reference"
    assert jnp.allclose(attn1, ref_a1, atol=2e-3, rtol=2e-3), "attn1 mismatch vs JAX reference"
    assert jnp.allclose(attn2, ref_a2, atol=2e-3, rtol=2e-3), "attn2 mismatch vs JAX reference"

    print("KERNEL_OK")
</pallas_src>

<mosaic_0001>
module attributes {stable_mosaic.version = 11 : i64} {
  func.func @_copy(%arg0: i32, %arg1: memref<8x128xf32, #tpu.memory_space<vmem>>, %arg2: memref<8x128xf32, #tpu.memory_space<vmem>>) attributes {dimension_semantics = [#tpu.dimension_semantics<arbitrary>], iteration_bounds = array<i64: 1>, scalar_prefetch = 0 : i64, scratch_operands = 0 : i64, tpu.core_type = #tpu.core_type<tc>, window_params = [{pipeline_mode = #tpu.pipeline_mode<synchronous>, transform_indices = @transform_0, window_bounds = array<i64: 8, 128>}, {pipeline_mode = #tpu.pipeline_mode<synchronous>, transform_indices = @transform_1, window_bounds = array<i64: 8, 128>}]} {
    %c0 = arith.constant 0 : index
    %c0_0 = arith.constant 0 : index
    %0 = vector.load %arg1[%c0, %c0_0] : memref<8x128xf32, #tpu.memory_space<vmem>>, vector<8x128xf32>
    %c0_1 = arith.constant 0 : index
    %c0_2 = arith.constant 0 : index
    %1 = vector.load %arg2[%c0_1, %c0_2] : memref<8x128xf32, #tpu.memory_space<vmem>>, vector<8x128xf32>
    tpu.vector_store %arg2[%c0_1, %c0_2], %0 {strides = array<i32>} : memref<8x128xf32, #tpu.memory_space<vmem>>, vector<8x128xf32>,
    return
  }
  func.func @transform_0(%arg0: i32) -> (i32, i32) {
    %c0_i32 = arith.constant 0 : i32
    %c0_i32_0 = arith.constant 0 : i32
    %c0_i32_1 = arith.constant 0 : i32
    return %c0_i32, %c0_i32_0 : i32, i32
  }
  func.func @transform_1(%arg0: i32) -> (i32, i32) {
    %c0_i32 = arith.constant 0 : i32
    %c0_i32_0 = arith.constant 0 : i32
    %c0_i32_1 = arith.constant 0 : i32
    return %c0_i32, %c0_i32_0 : i32, i32
  }
}

module attributes {stable_mosaic.version = 11 : i64} {
  func.func @mha_kernel(%arg0: i32, %arg1: i32, %arg2: memref<1x8x32xf32, #tpu.memory_space<vmem>>, %arg3: memref<1x8x32xf32, #tpu.memory_space<vmem>>, %arg4: memref<1x8x8xf32, #tpu.memory_space<vmem>>, %arg5: memref<32x32xf32, #tpu.memory_space<vmem>>, %arg6: memref<1x32xf32, #tpu.memory_space<vmem>>, %arg7: memref<32x64xf32, #tpu.memory_space<vmem>>, %arg8: memref<1x64xf32, #tpu.memory_space<vmem>>, %arg9: memref<32x32xf32, #tpu.memory_space<vmem>>, %arg10: memref<1x32xf32, #tpu.memory_space<vmem>>, %arg11: memref<1x32xf32, #tpu.memory_space<vmem>>, %arg12: memref<1x32xf32, #tpu.memory_space<vmem>>, %arg13: memref<1x8x32xf32, #tpu.memory_space<vmem>>, %arg14: memref<1x4x8x8xf32, #tpu.memory_space<vmem>>, %arg15: memref<4x8x8xf32, #tpu.memory_space<vmem>>, %arg16: memref<4x8x8xf32, #tpu.memory_space<vmem>>, %arg17: memref<4x8x8xf32, #tpu.memory_space<vmem>>, %arg18: memref<8x32xf32, #tpu.memory_space<vmem>>) attributes {dimension_semantics = [#tpu.dimension_semantics<parallel>, #tpu.dimension_semantics<arbitrary>], iteration_bounds = array<i64: 2, 1>, scalar_prefetch = 0 : i64, scratch_operands = 4 : i64, tpu.core_type = #tpu.core_type<tc>, window_params = [{transform_indices = @transform_0, window_bounds = array<i64: 1, 8, 32>}, {transform_indices = @transform_1, window_bounds = array<i64: 1, 8, 32>}, {transform_indices = @transform_2, window_bounds = array<i64: 1, 8, 8>}, {pipeline_mode = #tpu.pipeline_mode<synchronous>, transform_indices = @transform_3, window_bounds = array<i64: 32, 32>}, {pipeline_mode = #tpu.pipeline_mode<synchronous>, transform_indices = @transform_4, window_bounds = array<i64: 1, 32>}, {pipeline_mode = #tpu.pipeline_mode<synchronous>, transform_indices = @transform_5, window_bounds = array<i64: 32, 64>}, {pipeline_mode = #tpu.pipeline_mode<synchronous>, transform_indices = @transform_6, window_bounds = array<i64: 1, 64>}, {pipeline_mode = #tpu.pipeline_mode<synchronous>, transform_indices = @transform_7, window_bounds = array<i64: 32, 32>}, {pipeline_mode = #tpu.pipeline_mode<synchronous>, transform_indices = @transform_8, window_bounds = array<i64: 1, 32>}, {pipeline_mode = #tpu.pipeline_mode<synchronous>, transform_indices = @transform_9, window_bounds = array<i64: 1, 32>}, {pipeline_mode = #tpu.pipeline_mode<synchronous>, transform_indices = @transform_10, window_bounds = array<i64: 1, 32>}, {transform_indices = @transform_11, window_bounds = array<i64: 1, 8, 32>}, {transform_indices = @transform_12, window_bounds = array<i64: 1, 4, 8, 8>}]} {
    %c0_i32 = arith.constant 0 : i32
    %0 = arith.cmpi eq, %arg1, %c0_i32 : i32
    %1 = arith.extui %0 : i1 to i32
    %c0_i32_0 = arith.constant 0 : i32
    %2 = arith.cmpi ne, %1, %c0_i32_0 : i32
    scf.if %2 {
      %c0_63 = arith.constant 0 : index
      %c0_64 = arith.constant 0 : index
      %c0_65 = arith.constant 0 : index
      %99 = vector.load %arg3[%c0_63, %c0_64, %c0_65] : memref<1x8x32xf32, #tpu.memory_space<vmem>>, vector<1x8x32xf32>
      %100 = vector.shape_cast %99 : vector<1x8x32xf32> to vector<8x32xf32>
      %c0_66 = arith.constant 0 : index
      %c0_67 = arith.constant 0 : index
      %101 = vector.load %arg7[%c0_66, %c0_67] : memref<32x64xf32, #tpu.memory_space<vmem>>, vector<32x64xf32>
      %cst_68 = arith.constant dense<0.000000e+00> : vector<8x64xf32>
      %102 = tpu.matmul %100, %101, %cst_68 {dimension_numbers = #tpu.dot_dimension_numbers<[1], [0], [0], [1], [0, 0, 1, 1], [], []>} : vector<8x32xf32>, vector<32x64xf32>, vector<8x64xf32> -> vector<8x64xf32>
      %c0_69 = arith.constant 0 : index
      %c0_70 = arith.constant 0 : index
      %103 = vector.load %arg8[%c0_69, %c0_70] : memref<1x64xf32, #tpu.memory_space<vmem>>, vector<1x64xf32>
      %104 = vector.broadcast %103 : vector<1x64xf32> to vector<8x64xf32>
      %105 = arith.addf %102, %104 : vector<8x64xf32>
      %106 = vector.extract_strided_slice %105 {offsets = [0, 0], sizes = [8, 8], strides = [1, 1]} : vector<8x64xf32> to vector<8x8xf32>
      %c0_71 = arith.constant 0 : index
      %c0_72 = arith.constant 0 : index
      %c0_73 = arith.constant 0 : index
      %107 = vector.load %arg16[%c0_71, %c0_72, %c0_73] : memref<4x8x8xf32, #tpu.memory_space<vmem>>, vector<1x8x8xf32>
      %108 = vector.shape_cast %107 : vector<1x8x8xf32> to vector<8x8xf32>
      %109 = vector.shape_cast %106 : vector<8x8xf32> to vector<1x8x8xf32>
      tpu.vector_store %arg16[%c0_71, %c0_72, %c0_73], %109 {strides = array<i32>} : memref<4x8x8xf32, #tpu.memory_space<vmem>>, vector<1x8x8xf32>,
      %110 = vector.extract_strided_slice %105 {offsets = [0, 32], sizes = [8, 8], strides = [1, 1]} : vector<8x64xf32> to vector<8x8xf32>
      %c0_74 = arith.constant 0 : index
      %c0_75 = arith.constant 0 : index
      %c0_76 = arith.constant 0 : index
      %111 = vector.load %arg17[%c0_74, %c0_75, %c0_76] : memref<4x8x8xf32, #tpu.memory_space<vmem>>, vector<1x8x8xf32>
      %112 = vector.shape_cast %111 : vector<1x8x8xf32> to vector<8x8xf32>
      %113 = vector.shape_cast %110 : vector<8x8xf32> to vector<1x8x8xf32>
      tpu.vector_store %arg17[%c0_74, %c0_75, %c0_76], %113 {strides = array<i32>} : memref<4x8x8xf32, #tpu.memory_space<vmem>>, vector<1x8x8xf32>,
      %114 = vector.extract_strided_slice %105 {offsets = [0, 8], sizes = [8, 8], strides = [1, 1]} : vector<8x64xf32> to vector<8x8xf32>
      %c1_77 = arith.constant 1 : index
      %c0_78 = arith.constant 0 : index
      %c0_79 = arith.constant 0 : index
      %115 = vector.load %arg16[%c1_77, %c0_78, %c0_79] : memref<4x8x8xf32, #tpu.memory_space<vmem>>, vector<1x8x8xf32>
      %116 = vector.shape_cast %115 : vector<1x8x8xf32> to vector<8x8xf32>
      %117 = vector.shape_cast %114 : vector<8x8xf32> to vector<1x8x8xf32>
      tpu.vector_store %arg16[%c1_77, %c0_78, %c0_79], %117 {strides = array<i32>} : memref<4x8x8xf32, #tpu.memory_space<vmem>>, vector<1x8x8xf32>,
      %118 = vector.extract_strided_slice %105 {offsets = [0, 40], sizes = [8, 8], strides = [1, 1]} : vector<8x64xf32> to vector<8x8xf32>
      %c1_80 = arith.constant 1 : index
      %c0_81 = arith.constant 0 : index
      %c0_82 = arith.constant 0 : index
      %119 = vector.load %arg17[%c1_80, %c0_81, %c0_82] : memref<4x8x8xf32, #tpu.memory_space<vmem>>, vector<1x8x8xf32>
      %120 = vector.shape_cast %119 : vector<1x8x8xf32> to vector<8x8xf32>
      %121 = vector.shape_cast %118 : vector<8x8xf32> to vector<1x8x8xf32>
      tpu.vector_store %arg17[%c1_80, %c0_81, %c0_82], %121 {strides = array<i32>} : memref<4x8x8xf32, #tpu.memory_space<vmem>>, vector<1x8x8xf32>,
      %122 = vector.extract_strided_slice %105 {offsets = [0, 16], sizes = [8, 8], strides = [1, 1]} : vector<8x64xf32> to vector<8x8xf32>
      %c2_83 = arith.constant 2 : index
      %c0_84 = arith.constant 0 : index
      %c0_85 = arith.constant 0 : index
      %123 = vector.load %arg16[%c2_83, %c0_84, %c0_85] : memref<4x8x8xf32, #tpu.memory_space<vmem>>, vector<1x8x8xf32>
      %124 = vector.shape_cast %123 : vector<1x8x8xf32> to vector<8x8xf32>
      %125 = vector.shape_cast %122 : vector<8x8xf32> to vector<1x8x8xf32>
      tpu.vector_store %arg16[%c2_83, %c0_84, %c0_85], %125 {strides = array<i32>} : memref<4x8x8xf32, #tpu.memory_space<vmem>>, vector<1x8x8xf32>,
      %126 = vector.extract_strided_slice %105 {offsets = [0, 48], sizes = [8, 8], strides = [1, 1]} : vector<8x64xf32> to vector<8x8xf32>
      %c2_86 = arith.constant 2 : index
      %c0_87 = arith.constant 0 : index
      %c0_88 = arith.constant 0 : index
      %127 = vector.load %arg17[%c2_86, %c0_87, %c0_88] : memref<4x8x8xf32, #tpu.memory_space<vmem>>, vector<1x8x8xf32>
      %128 = vector.shape_cast %127 : vector<1x8x8xf32> to vector<8x8xf32>
      %129 = vector.shape_cast %126 : vector<8x8xf32> to vector<1x8x8xf32>
      tpu.vector_store %arg17[%c2_86, %c0_87, %c0_88], %129 {strides = array<i32>} : memref<4x8x8xf32, #tpu.memory_space<vmem>>, vector<1x8x8xf32>,
      %130 = vector.extract_strided_slice %105 {offsets = [0, 24], sizes = [8, 8], strides = [1, 1]} : vector<8x64xf32> to vector<8x8xf32>
      %c3_89 = arith.constant 3 : index
      %c0_90 = arith.constant 0 : index
      %c0_91 = arith.constant 0 : index
      %131 = vector.load %arg16[%c3_89, %c0_90, %c0_91] : memref<4x8x8xf32, #tpu.memory_space<vmem>>, vector<1x8x8xf32>
      %132 = vector.shape_cast %131 : vector<1x8x8xf32> to vector<8x8xf32>
      %133 = vector.shape_cast %130 : vector<8x8xf32> to vector<1x8x8xf32>
      tpu.vector_store %arg16[%c3_89, %c0_90, %c0_91], %133 {strides = array<i32>} : memref<4x8x8xf32, #tpu.memory_space<vmem>>, vector<1x8x8xf32>,
      %134 = vector.extract_strided_slice %105 {offsets = [0, 56], sizes = [8, 8], strides = [1, 1]} : vector<8x64xf32> to vector<8x8xf32>
      %c3_92 = arith.constant 3 : index
      %c0_93 = arith.constant 0 : index
      %c0_94 = arith.constant 0 : index
      %135 = vector.load %arg17[%c3_92, %c0_93, %c0_94] : memref<4x8x8xf32, #tpu.memory_space<vmem>>, vector<1x8x8xf32>
      %136 = vector.shape_cast %135 : vector<1x8x8xf32> to vector<8x8xf32>
      %137 = vector.shape_cast %134 : vector<8x8xf32> to vector<1x8x8xf32>
      tpu.vector_store %arg17[%c3_92, %c0_93, %c0_94], %137 {strides = array<i32>} : memref<4x8x8xf32, #tpu.memory_space<vmem>>, vector<1x8x8xf32>,
    } else {
    }
    %c0 = arith.constant 0 : index
    %c0_1 = arith.constant 0 : index
    %c0_2 = arith.constant 0 : index
    %3 = vector.load %arg2[%c0, %c0_1, %c0_2] : memref<1x8x32xf32, #tpu.memory_space<vmem>>, vector<1x8x32xf32>
    %4 = vector.shape_cast %3 : vector<1x8x32xf32> to vector<8x32xf32>
    %c0_3 = arith.constant 0 : index
    %c0_4 = arith.constant 0 : index
    %5 = vector.load %arg5[%c0_3, %c0_4] : memref<32x32xf32, #tpu.memory_space<vmem>>, vector<32x32xf32>
    %cst = arith.constant dense<0.000000e+00> : vector<8x32xf32>
    %6 = tpu.matmul %4, %5, %cst {dimension_numbers = #tpu.dot_dimension_numbers<[1], [0], [0], [1], [0, 0, 1, 1], [], []>} : vector<8x32xf32>, vector<32x32xf32>, vector<8x32xf32> -> vector<8x32xf32>
    %c0_5 = arith.constant 0 : index
    %c0_6 = arith.constant 0 : index
    %7 = vector.load %arg6[%c0_5, %c0_6] : memref<1x32xf32, #tpu.memory_space<vmem>>, vector<1x32xf32>
    %8 = vector.broadcast %7 : vector<1x32xf32> to vector<8x32xf32>
    %9 = arith.addf %6, %8 : vector<8x32xf32>
    %cst_7 = arith.constant 0.353553385 : f32
    %10 = vector.broadcast %cst_7 : f32 to vector<8x32xf32>
    %11 = arith.mulf %9, %10 : vector<8x32xf32>
    %12 = vector.extract_strided_slice %11 {offsets = [0, 0], sizes = [8, 8], strides = [1, 1]} : vector<8x32xf32> to vector<8x8xf32>
    %c0_8 = arith.constant 0 : index
    %c0_9 = arith.constant 0 : index
    %c0_10 = arith.constant 0 : index
    %13 = vector.load %arg15[%c0_8, %c0_9, %c0_10] : memref<4x8x8xf32, #tpu.memory_space<vmem>>, vector<1x8x8xf32>
    %14 = vector.shape_cast %13 : vector<1x8x8xf32> to vector<8x8xf32>
    %15 = vector.shape_cast %12 : vector<8x8xf32> to vector<1x8x8xf32>
    tpu.vector_store %arg15[%c0_8, %c0_9, %c0_10], %15 {strides = array<i32>} : memref<4x8x8xf32, #tpu.memory_space<vmem>>, vector<1x8x8xf32>,
    %16 = vector.extract_strided_slice %11 {offsets = [0, 8], sizes = [8, 8], strides = [1, 1]} : vector<8x32xf32> to vector<8x8xf32>
    %c1 = arith.constant 1 : index
    %c0_11 = arith.constant 0 : index
    %c0_12 = arith.constant 0 : index
    %17 = vector.load %arg15[%c1, %c0_11, %c0_12] : memref<4x8x8xf32, #tpu.memory_space<vmem>>, vector<1x8x8xf32>
    %18 = vector.shape_cast %17 : vector<1x8x8xf32> to vector<8x8xf32>
    %19 = vector.shape_cast %16 : vector<8x8xf32> to vector<1x8x8xf32>
    tpu.vector_store %arg15[%c1, %c0_11, %c0_12], %19 {strides = array<i32>} : memref<4x8x8xf32, #tpu.memory_space<vmem>>, vector<1x8x8xf32>,
    %20 = vector.extract_strided_slice %11 {offsets = [0, 16], sizes = [8, 8], strides = [1, 1]} : vector<8x32xf32> to vector<8x8xf32>
    %c2 = arith.constant 2 : index
    %c0_13 = arith.constant 0 : index
    %c0_14 = arith.constant 0 : index
    %21 = vector.load %arg15[%c2, %c0_13, %c0_14] : memref<4x8x8xf32, #tpu.memory_space<vmem>>, vector<1x8x8xf32>
    %22 = vector.shape_cast %21 : vector<1x8x8xf32> to vector<8x8xf32>
    %23 = vector.shape_cast %20 : vector<8x8xf32> to vector<1x8x8xf32>
    tpu.vector_store %arg15[%c2, %c0_13, %c0_14], %23 {strides = array<i32>} : memref<4x8x8xf32, #tpu.memory_space<vmem>>, vector<1x8x8xf32>,
    %24 = vector.extract_strided_slice %11 {offsets = [0, 24], sizes = [8, 8], strides = [1, 1]} : vector<8x32xf32> to vector<8x8xf32>
    %c3 = arith.constant 3 : index
    %c0_15 = arith.constant 0 : index
    %c0_16 = arith.constant 0 : index
    %25 = vector.load %arg15[%c3, %c0_15, %c0_16] : memref<4x8x8xf32, #tpu.memory_space<vmem>>, vector<1x8x8xf32>
    %26 = vector.shape_cast %25 : vector<1x8x8xf32> to vector<8x8xf32>
    %27 = vector.shape_cast %24 : vector<8x8xf32> to vector<1x8x8xf32>
    tpu.vector_store %arg15[%c3, %c0_15, %c0_16], %27 {strides = array<i32>} : memref<4x8x8xf32, #tpu.memory_space<vmem>>, vector<1x8x8xf32>,
    %c0_17 = arith.constant 0 : index
    %c0_18 = arith.constant 0 : index
    %c0_19 = arith.constant 0 : index
    %28 = vector.load %arg15[%c0_17, %c0_18, %c0_19] : memref<4x8x8xf32, #tpu.memory_space<vmem>>, vector<4x8x8xf32>
    %c0_20 = arith.constant 0 : index
    %c0_21 = arith.constant 0 : index
    %c0_22 = arith.constant 0 : index
    %29 = vector.load %arg16[%c0_20, %c0_21, %c0_22] : memref<4x8x8xf32, #tpu.memory_space<vmem>>, vector<4x8x8xf32>
    %c0_23 = arith.constant 0 : index
    %c0_24 = arith.constant 0 : index
    %c0_25 = arith.constant 0 : index
    %30 = vector.load %arg17[%c0_23, %c0_24, %c0_25] : memref<4x8x8xf32, #tpu.memory_space<vmem>>, vector<4x8x8xf32>
    "tpu.trace_start"() <{level = 10 : i32, message = "hqd,hkd->hqk"}> : () -> ()
    %cst_26 = arith.constant dense<0.000000e+00> : vector<4x8x8xf32>
    %31 = tpu.matmul %28, %29, %cst_26 {dimension_numbers = #tpu.dot_dimension_numbers<[2], [2], [1], [1], [0, 0, 0, 1, 1, 1], [0], [0]>} : vector<4x8x8xf32>, vector<4x8x8xf32>, vector<4x8x8xf32> -> vector<4x8x8xf32>
    "tpu.trace_stop"() : () -> ()
    %c0_27 = arith.constant 0 : index
    %c0_28 = arith.constant 0 : index
    %c0_29 = arith.constant 0 : index
    %32 = vector.load %arg4[%c0_27, %c0_28, %c0_29] : memref<1x8x8xf32, #tpu.memory_space<vmem>>, vector<1x8x8xf32>
    %33 = vector.shape_cast %32 : vector<1x8x8xf32> to vector<8x8xf32>
    %cst_30 = arith.constant 0.000000e+00 : f32
    %34 = vector.broadcast %cst_30 : f32 to vector<8x8xf32>
    %35 = arith.cmpf oeq, %33, %34 : vector<8x8xf32>
    %36 = vector.shape_cast %35 : vector<8x8xi1> to vector<1x8x8xi1>
    %cst_31 = arith.constant -1.000000e+09 : f32
    %37 = vector.shape_cast %36 : vector<1x8x8xi1> to vector<1x8x8xi1>
    %38 = vector.broadcast %37 : vector<1x8x8xi1> to vector<4x8x8xi1>
    %39 = vector.broadcast %cst_31 : f32 to vector<4x8x8xf32>
    %40 = arith.select %38, %39, %31 : vector<4x8x8xi1>, vector<4x8x8xf32>
    %cst_32 = arith.constant dense<0xFF800000> : vector<4x8xf32>
    %41 = vector.multi_reduction <maximumf>, %40, %cst_32 [2] : vector<4x8x8xf32> to vector<4x8xf32>
    %42 = vector.shape_cast %41 : vector<4x8xf32> to vector<4x8x1xf32>
    %43 = vector.broadcast %42 : vector<4x8x1xf32> to vector<4x8x8xf32>
    %44 = arith.subf %40, %43 : vector<4x8x8xf32>
    %45 = math.exp %44 : vector<4x8x8xf32>
    %cst_33 = arith.constant dense<0.000000e+00> : vector<4x8xf32>
    %46 = vector.multi_reduction <add>, %45, %cst_33 [2] : vector<4x8x8xf32> to vector<4x8xf32>
    %47 = vector.shape_cast %46 : vector<4x8xf32> to vector<4x8x1xf32>
    %48 = tpu.reciprocal %47 {approx = true} : vector<4x8x1xf32> -> vector<4x8x1xf32>
    %49 = vector.broadcast %48 : vector<4x8x1xf32> to vector<4x8x8xf32>
    %50 = arith.mulf %45, %49 : vector<4x8x8xf32>
    %c0_34 = arith.constant 0 : index
    %c0_35 = arith.constant 0 : index
    %c0_36 = arith.constant 0 : index
    %c0_37 = arith.constant 0 : index
    %51 = vector.load %arg14[%c0_34, %c0_35, %c0_36, %c0_37] : memref<1x4x8x8xf32, #tpu.memory_space<vmem>>, vector<1x4x8x8xf32>
    %52 = vector.shape_cast %51 : vector<1x4x8x8xf32> to vector<4x8x8xf32>
    %53 = vector.shape_cast %50 : vector<4x8x8xf32> to vector<1x4x8x8xf32>
    tpu.vector_store %arg14[%c0_34, %c0_35, %c0_36, %c0_37], %53 {strides = array<i32>} : memref<1x4x8x8xf32, #tpu.memory_space<vmem>>, vector<1x4x8x8xf32>,
    "tpu.trace_start"() <{level = 10 : i32, message = "hqk,hkd->hqd"}> : () -> ()
    %cst_38 = arith.constant dense<0.000000e+00> : vector<4x8x8xf32>
    %54 = tpu.matmul %50, %30, %cst_38 {dimension_numbers = #tpu.dot_dimension_numbers<[2], [1], [1], [2], [0, 0, 0, 1, 1, 2], [0], [0]>} : vector<4x8x8xf32>, vector<4x8x8xf32>, vector<4x8x8xf32> -> vector<4x8x8xf32>
    "tpu.trace_stop"() : () -> ()
    %55 = vector.extract_strided_slice %54 {offsets = [0, 0, 0], sizes = [1, 8, 8], strides = [1, 1, 1]} : vector<4x8x8xf32> to vector<1x8x8xf32>
    %56 = vector.shape_cast %55 : vector<1x8x8xf32> to vector<8x8xf32>
    %c0_39 = arith.constant 0 : index
    %c0_40 = arith.constant 0 : index
    %57 = vector.load %arg18[%c0_39, %c0_40] : memref<8x32xf32, #tpu.memory_space<vmem>>, vector<8x8xf32>
    tpu.vector_store %arg18[%c0_39, %c0_40], %56 {strides = array<i32>} : memref<8x32xf32, #tpu.memory_space<vmem>>, vector<8x8xf32>,
    %58 = vector.extract_strided_slice %54 {offsets = [1, 0, 0], sizes = [1, 8, 8], strides = [1, 1, 1]} : vector<4x8x8xf32> to vector<1x8x8xf32>
    %59 = vector.shape_cast %58 : vector<1x8x8xf32> to vector<8x8xf32>
    %c0_41 = arith.constant 0 : index
    %c8 = arith.constant 8 : index
    %60 = vector.load %arg18[%c0_41, %c8] : memref<8x32xf32, #tpu.memory_space<vmem>>, vector<8x8xf32>
    tpu.vector_store %arg18[%c0_41, %c8], %59 {strides = array<i32>} : memref<8x32xf32, #tpu.memory_space<vmem>>, vector<8x8xf32>,
    %61 = vector.extract_strided_slice %54 {offsets = [2, 0, 0], sizes = [1, 8, 8], strides = [1, 1, 1]} : vector<4x8x8xf32> to vector<1x8x8xf32>
    %62 = vector.shape_cast %61 : vector<1x8x8xf32> to vector<8x8xf32>
    %c0_42 = arith.constant 0 : index
    %c16 = arith.constant 16 : index
    %63 = vector.load %arg18[%c0_42, %c16] : memref<8x32xf32, #tpu.memory_space<vmem>>, vector<8x8xf32>
    tpu.vector_store %arg18[%c0_42, %c16], %62 {strides = array<i32>} : memref<8x32xf32, #tpu.memory_space<vmem>>, vector<8x8xf32>,
    %64 = vector.extract_strided_slice %54 {offsets = [3, 0, 0], sizes = [1, 8, 8], strides = [1, 1, 1]} : vector<4x8x8xf32> to vector<1x8x8xf32>
    %65 = vector.shape_cast %64 : vector<1x8x8xf32> to vector<8x8xf32>
    %c0_43 = arith.constant 0 : index
    %c24 = arith.constant 24 : index
    %66 = vector.load %arg18[%c0_43, %c24] : memref<8x32xf32, #tpu.memory_space<vmem>>, vector<8x8xf32>
    tpu.vector_store %arg18[%c0_43, %c24], %65 {strides = array<i32>} : memref<8x32xf32, #tpu.memory_space<vmem>>, vector<8x8xf32>,
    %c0_44 = arith.constant 0 : index
    %c0_45 = arith.constant 0 : index
    %67 = vector.load %arg18[%c0_44, %c0_45] : memref<8x32xf32, #tpu.memory_space<vmem>>, vector<8x32xf32>
    %c0_46 = arith.constant 0 : index
    %c0_47 = arith.constant 0 : index
    %68 = vector.load %arg9[%c0_46, %c0_47] : memref<32x32xf32, #tpu.memory_space<vmem>>, vector<32x32xf32>
    %cst_48 = arith.constant dense<0.000000e+00> : vector<8x32xf32>
    %69 = tpu.matmul %67, %68, %cst_48 {dimension_numbers = #tpu.dot_dimension_numbers<[1], [0], [0], [1], [0, 0, 1, 1], [], []>} : vector<8x32xf32>, vector<32x32xf32>, vector<8x32xf32> -> vector<8x32xf32>
    %c0_49 = arith.constant 0 : index
    %c0_50 = arith.constant 0 : index
    %70 = vector.load %arg10[%c0_49, %c0_50] : memref<1x32xf32, #tpu.memory_space<vmem>>, vector<1x32xf32>
    %71 = vector.broadcast %70 : vector<1x32xf32> to vector<8x32xf32>
    %72 = arith.addf %69, %71 : vector<8x32xf32>
    %73 = arith.addf %72, %4 : vector<8x32xf32>
    %c0_51 = arith.constant 0 : index
    %c0_52 = arith.constant 0 : index
    %74 = vector.load %arg11[%c0_51, %c0_52] : memref<1x32xf32, #tpu.memory_space<vmem>>, vector<1x32xf32>
    %c0_53 = arith.constant 0 : index
    %c0_54 = arith.constant 0 : index
    %75 = vector.load %arg12[%c0_53, %c0_54] : memref<1x32xf32, #tpu.memory_space<vmem>>, vector<1x32xf32>
    %cst_55 = arith.constant dense<0.000000e+00> : vector<8xf32>
    %76 = vector.multi_reduction <add>, %73, %cst_55 [1] : vector<8x32xf32> to vector<8xf32>
    %77 = vector.shape_cast %76 : vector<8xf32> to vector<8x1xf32>
    %cst_56 = arith.constant 3.200000e+01 : f32
    %78 = vector.broadcast %cst_56 : f32 to vector<8x1xf32>
    %79 = arith.divf %77, %78 : vector<8x1xf32>
    %80 = vector.broadcast %79 : vector<8x1xf32> to vector<8x32xf32>
    %81 = arith.subf %73, %80 : vector<8x32xf32>
    %82 = arith.mulf %81, %81 : vector<8x32xf32>
    %cst_57 = arith.constant dense<0.000000e+00> : vector<8xf32>
    %83 = vector.multi_reduction <add>, %82, %cst_57 [1] : vector<8x32xf32> to vector<8xf32>
    %84 = vector.shape_cast %83 : vector<8xf32> to vector<8x1xf32>
    %cst_58 = arith.constant 3.200000e+01 : f32
    %85 = vector.broadcast %cst_58 : f32 to vector<8x1xf32>
    %86 = arith.divf %84, %85 : vector<8x1xf32>
    %cst_59 = arith.constant 9.99999974E-6 : f32
    %87 = vector.broadcast %cst_59 : f32 to vector<8x1xf32>
    %88 = arith.addf %86, %87 : vector<8x1xf32>
    %89 = math.rsqrt %88 : vector<8x1xf32>
    %90 = vector.broadcast %89 : vector<8x1xf32> to vector<8x32xf32>
    %91 = arith.mulf %81, %90 : vector<8x32xf32>
    %92 = vector.broadcast %74 : vector<1x32xf32> to vector<8x32xf32>
    %93 = arith.mulf %91, %92 : vector<8x32xf32>
    %94 = vector.broadcast %75 : vector<1x32xf32> to vector<8x32xf32>
    %95 = arith.addf %93, %94 : vector<8x32xf32>
    %c0_60 = arith.constant 0 : index
    %c0_61 = arith.constant 0 : index
    %c0_62 = arith.constant 0 : index
    %96 = vector.load %arg13[%c0_60, %c0_61, %c0_62] : memref<1x8x32xf32, #tpu.memory_space<vmem>>, vector<1x8x32xf32>
    %97 = vector.shape_cast %96 : vector<1x8x32xf32> to vector<8x32xf32>
    %98 = vector.shape_cast %95 : vector<8x32xf32> to vector<1x8x32xf32>
    tpu.vector_store %arg13[%c0_60, %c0_61, %c0_62], %98 {strides = array<i32>} : memref<1x8x32xf32, #tpu.memory_space<vmem>>, vector<1x8x32xf32>,
    return
  }
  func.func @transform_0(%arg0: i32, %arg1: i32) -> (i32, i32, i32) {
    %c0_i32 = arith.constant 0 : i32
    %c0_i32_0 = arith.constant 0 : i32
    return %arg0, %arg1, %c0_i32 : i32, i32, i32
  }
  func.func @transform_1(%arg0: i32, %arg1: i32) -> (i32, i32, i32) {
    %c0_i32 = arith.constant 0 : i32
    %c0_i32_0 = arith.constant 0 : i32
    %c0_i32_1 = arith.constant 0 : i32
    return %arg0, %c0_i32, %c0_i32_0 : i32, i32, i32
  }
  func.func @transform_2(%arg0: i32, %arg1: i32) -> (i32, i32, i32) {
    %c0_i32 = arith.constant 0 : i32
    %c0_i32_0 = arith.constant 0 : i32
    return %arg0, %arg1, %c0_i32 : i32, i32, i32
  }
  func.func @transform_3(%arg0: i32, %arg1: i32) -> (i32, i32) {
    %c0_i32 = arith.constant 0 : i32
    %c0_i32_0 = arith.constant 0 : i32
    %c0_i32_1 = arith.constant 0 : i32
    return %c0_i32, %c0_i32_0 : i32, i32
  }
  func.func @transform_4(%arg0: i32, %arg1: i32) -> (i32, i32) {
    %c0_i32 = arith.constant 0 : i32
    %c0_i32_0 = arith.constant 0 : i32
    %c0_i32_1 = arith.constant 0 : i32
    return %c0_i32, %c0_i32_0 : i32, i32
  }
  func.func @transform_5(%arg0: i32, %arg1: i32) -> (i32, i32) {
    %c0_i32 = arith.constant 0 : i32
    %c0_i32_0 = arith.constant 0 : i32
    %c0_i32_1 = arith.constant 0 : i32
    return %c0_i32, %c0_i32_0 : i32, i32
  }
  func.func @transform_6(%arg0: i32, %arg1: i32) -> (i32, i32) {
    %c0_i32 = arith.constant 0 : i32
    %c0_i32_0 = arith.constant 0 : i32
    %c0_i32_1 = arith.constant 0 : i32
    return %c0_i32, %c0_i32_0 : i32, i32
  }
  func.func @transform_7(%arg0: i32, %arg1: i32) -> (i32, i32) {
    %c0_i32 = arith.constant 0 : i32
    %c0_i32_0 = arith.constant 0 : i32
    %c0_i32_1 = arith.constant 0 : i32
    return %c0_i32, %c0_i32_0 : i32, i32
  }
  func.func @transform_8(%arg0: i32, %arg1: i32) -> (i32, i32) {
    %c0_i32 = arith.constant 0 : i32
    %c0_i32_0 = arith.constant 0 : i32
    %c0_i32_1 = arith.constant 0 : i32
    return %c0_i32, %c0_i32_0 : i32, i32
  }
  func.func @transform_9(%arg0: i32, %arg1: i32) -> (i32, i32) {
    %c0_i32 = arith.constant 0 : i32
    %c0_i32_0 = arith.constant 0 : i32
    %c0_i32_1 = arith.constant 0 : i32
    return %c0_i32, %c0_i32_0 : i32, i32
  }
  func.func @transform_10(%arg0: i32, %arg1: i32) -> (i32, i32) {
    %c0_i32 = arith.constant 0 : i32
    %c0_i32_0 = arith.constant 0 : i32
    %c0_i32_1 = arith.constant 0 : i32
    return %c0_i32, %c0_i32_0 : i32, i32
  }
  func.func @transform_11(%arg0: i32, %arg1: i32) -> (i32, i32, i32) {
    %c0_i32 = arith.constant 0 : i32
    %c0_i32_0 = arith.constant 0 : i32
    return %arg0, %arg1, %c0_i32 : i32, i32, i32
  }
  func.func @transform_12(%arg0: i32, %arg1: i32) -> (i32, i32, i32, i32) {
    %c0_i32 = arith.constant 0 : i32
    %c0_i32_0 = arith.constant 0 : i32
    %c0_i32_1 = arith.constant 0 : i32
    return %arg0, %c0_i32, %arg1, %c0_i32_0 : i32, i32, i32, i32
  }
}

</mosaic_0001>

<llo_original>
// kernel: tpu_custom_call.1
$region0: #{tpu_custom_call.1}
  #allocation0 [shape = 'u32[]', space=smem, size = 0x4, offset = 0x4, fixed_abs, tag = 'smem constant byte address 0x4 - core index']
  #allocation1 [shape = 'u32[144,128]{1,0:T(1,128)}', space=vmem, size = 0x12000, scoped, tag = 'internal scratch']
  %s0 = inlined_call_operand.hbm [shape: f32[8,128], index: 0, kind: input, shape index: {}]
  %s1 = inlined_call_operand.hbm [shape: f32[8,128], index: 1, kind: output, shape index: {}]
  %s2 = sld [smem:[#allocation0]]
  $region18: #{tpu_custom_call.1} parent=0
    _
  %s4 = ssub.s32 1, %s2
  %s5 = scalar_select 0, %s4, %s2
  $region1: #{tpu_custom_call.1} parent=0
    #allocation2 [shape = 'u8[4096]{0}', space=vmem, size = 0x1000, scoped, tag = 'input window, operand 0, single buffered']
    #allocation3 [shape = 's32[1]{0}', space=sflag, size = 0x4, scoped, tag = 'scoped memory for tpu_custom_call.1']
    #allocation4 [shape = 's32[1]{0}', space=sflag, size = 0x4, scoped, tag = 'scoped memory for tpu_custom_call.1']
    #allocation5 [shape = 'u8[4096]{0}', space=vmem, size = 0x1000, scoped, tag = 'output window, operand 0, single buffered']
    %6 = vsyncpa [#allocation3], 0
    %7 = vsyncpa [#allocation4], 0
    // Predicated region
    $region2: #{tpu_custom_call.1} parent=1 // pred_check
      _
    $region3: #{tpu_custom_call.1} parent=1 // pred_check_branch
      %9 = sbr.rel (0) target = $region5
    $region4: #{tpu_custom_call.1} parent=1 // pred_region
      %s11 = ssub.s32 128, 128
      %12 = vsyncadd [#allocation3], %s11
      %s14 = sshll.u32 [#allocation2], 4
      %s15 = int_to_ptr.vmem [resolvable:$true] %s14
      %17 = dma.hbm_to_vmem [thread:$0]  %s0, 128, %s15, [#allocation3]
    $region5: #{tpu_custom_call.1} parent=1 // pred_fallthru
      _
    // Predicated region
    $region6: #{tpu_custom_call.1} parent=1 // pred_check
      _
    $region7: #{tpu_custom_call.1} parent=1 // pred_check_branch
      %19 = sbr.rel (0) target = $region9
    $region8: #{tpu_custom_call.1} parent=1 // pred_region
      %20 = dma.done [#allocation3], 128
    $region9: #{tpu_custom_call.1} parent=1 // pred_fallthru
      _
    %v21 = vld [vmem:[#allocation2] sm:$0xff]
    %22 = vst [vmem:[#allocation5] sm:$0xff] %v21
    // Predicated region
    $region10: #{tpu_custom_call.1} parent=1 // pred_check
      _
    $region11: #{tpu_custom_call.1} parent=1 // pred_check_branch
      %24 = sbr.rel (0) target = $region13
    $region12: #{tpu_custom_call.1} parent=1 // pred_region
      %s26 = ssub.s32 128, 128
      %27 = vsyncadd [#allocation4], %s26
      %s29 = sshll.u32 [#allocation5], 4
      %s30 = int_to_ptr.vmem [resolvable:$true] %s29
      %32 = dma.vmem_to_hbm [thread:$0]  %s30, 128, %s1, [#allocation4]
    $region13: #{tpu_custom_call.1} parent=1 // pred_fallthru
      _
    // Predicated region
    $region14: #{tpu_custom_call.1} parent=1 // pred_check
      _
    $region15: #{tpu_custom_call.1} parent=1 // pred_check_branch
      %34 = sbr.rel (0) target = $region17
    $region16: #{tpu_custom_call.1} parent=1 // pred_region
      %35 = dma.done [#allocation4], 128
    $region17: #{tpu_custom_call.1} parent=1 // pred_fallthru
      _
    %36 = vsyncpa [#allocation3], 1
    %37 = vsyncpa [#allocation4], 1

// kernel: tpu_custom_call.1
$region0: #{tpu_custom_call.1}
  #allocation0 [shape = 'u32[]', space=smem, size = 0x4, offset = 0x4, fixed_abs, tag = 'smem constant byte address 0x4 - core index']
  #allocation1 [shape = 'u32[144,128]{1,0:T(1,128)}', space=vmem, size = 0x12000, scoped, tag = 'internal scratch']
  #allocation2 [shape = 'f32[4,8,8]{2,1,0:T(8,128)}', space=vmem, size = 0x4000, scoped, tag = 'scratch operand']
  #allocation3 [shape = 'f32[4,8,8]{2,1,0:T(8,128)}', space=vmem, size = 0x4000, scoped, tag = 'scratch operand']
  #allocation4 [shape = 'f32[4,8,8]{2,1,0:T(8,128)}', space=vmem, size = 0x4000, scoped, tag = 'scratch operand']
  #allocation5 [shape = 'f32[8,32]{1,0:T(8,128)}', space=vmem, size = 0x1000, scoped, tag = 'scratch operand']
  %s0 = inlined_call_operand.hbm [shape: f32[2,8,32], index: 0, kind: input, shape index: {}]
  %s1 = inlined_call_operand.hbm [shape: f32[2,8,32], index: 1, kind: input, shape index: {}]
  %s2 = inlined_call_operand.hbm [shape: f32[2,8,8], index: 2, kind: input, shape index: {}]
  %s3 = inlined_call_operand.hbm [shape: f32[32,32], index: 3, kind: input, shape index: {}]
  %s4 = inlined_call_operand.vmem [shape: f32[1,32], index: 4, kind: input, shape index: {}]
  %s5 = inlined_call_operand.hbm [shape: f32[32,64], index: 5, kind: input, shape index: {}]
  %s6 = inlined_call_operand.vmem [shape: f32[1,64], index: 6, kind: input, shape index: {}]
  %s7 = inlined_call_operand.hbm [shape: f32[32,32], index: 7, kind: input, shape index: {}]
  %s8 = inlined_call_operand.vmem [shape: f32[1,32], index: 8, kind: input, shape index: {}]
  %s9 = inlined_call_operand.vmem [shape: f32[1,32], index: 9, kind: input, shape index: {}]
  %s10 = inlined_call_operand.vmem [shape: f32[1,32], index: 10, kind: input, shape index: {}]
  %s11 = inlined_call_operand.hbm [shape: f32[2,8,32], index: 11, kind: output, shape index: {0}]
  %s12 = inlined_call_operand.hbm [shape: f32[2,4,8,8], index: 12, kind: output, shape index: {1}]
  %13 = xla_tuple %s11, %s12
  %s14 = sld [smem:[#allocation0]]
  $region113: #{tpu_custom_call.1} parent=0
    _
  %s16 = ssub.s32 1, %s14
  %s17 = scalar_select 0, %s16, %s14
  $region1: #{tpu_custom_call.1} parent=0
    #allocation6 [shape = 'u8[8192]{0}', space=vmem, size = 0x2000, scoped, tag = 'input window, operand 0']
    #allocation7 [shape = 's32[2]{0}', space=sflag, size = 0x8, scoped, tag = 'scoped memory for tpu_custom_call.1']
    #allocation8 [shape = 's32[2]{0}', space=sflag, size = 0x8, scoped, tag = 'scoped memory for tpu_custom_call.1']
    #allocation9 [shape = 'u8[8192]{0}', space=vmem, size = 0x2000, scoped, tag = 'input window, operand 1']
    #allocation10 [shape = 's32[2]{0}', space=sflag, size = 0x8, scoped, tag = 'scoped memory for tpu_custom_call.1']
    #allocation11 [shape = 'u8[8192]{0}', space=vmem, size = 0x2000, scoped, tag = 'input window, operand 2']
    #allocation12 [shape = 'u8[16384]{0}', space=vmem, size = 0x4000, scoped, tag = 'input window, operand 3, single buffered']
    #allocation13 [shape = 's32[1]{0}', space=sflag, size = 0x4, scoped, tag = 'scoped memory for tpu_custom_call.1']
    #allocation14 [shape = 'u8[16384]{0}', space=vmem, size = 0x4000, scoped, tag = 'input window, operand 5, single buffered']
    #allocation15 [shape = 'u8[16384]{0}', space=vmem, size = 0x4000, scoped, tag = 'input window, operand 7, single buffered']
    #allocation16 [shape = 's32[1]{0}', space=sflag, size = 0x4, scoped, tag = 'scoped memory for tpu_custom_call.1']
    #allocation17 [shape = 'u8[8192]{0}', space=vmem, size = 0x2000, scoped, tag = 'output window, operand 0']
    #allocation18 [shape = 'u8[32768]{0}', space=vmem, size = 0x8000, scoped, tag = 'output window, operand 1']
    #allocation19 [shape = 's32[2]{0}', space=sflag, size = 0x8, scoped, tag = 'scoped memory for tpu_custom_call.1']
    %18 = vsyncpa [#allocation7], 0
    %s19 = scalar_lea.sflag [#allocation7], 1
    %20 = vsyncpa %s19, 0
    %21 = vsyncpa [#allocation10], 0
    %s22 = scalar_lea.sflag [#allocation10], 1
    %23 = vsyncpa %s22, 0
    %24 = vsyncpa [#allocation13], 0
    %25 = vsyncpa [#allocation16], 0
    %26 = vsyncpa [#allocation8], 0
    %s27 = scalar_lea.sflag [#allocation8], 1
    %28 = vsyncpa %s27, 0
    %29 = vsyncpa [#allocation19], 0
    %s30 = scalar_lea.sflag [#allocation19], 1
    %31 = vsyncpa %s30, 0
    loop: start=0, step=1, limit=4
    $region2: #{tpu_custom_call.1} parent=1 // loop_pre_header
      _
    $region3: #{tpu_custom_call.1} parent=1 // loop_header
      %s33 = sphi 0, %s37
      %p34 = scmp.ge.s32.totalorder %s33, 4
      %s40 = sphi 0, %s52
      %s41 = sphi 0, %s48
      %s42 = sphi 0, %s40
      %s43 = sphi 0, %s41
      %s44 = sphi 0, %s42
      %s45 = sphi 0, %s43
      %s57 = sphi 0, %s59
      %s60 = sphi 0, %s57
      %s61 = sphi 0, %s60
      %s77 = sphi 0, %s61
      %s83 = sphi 0, %s85
      %s86 = sphi 0, %s83
      %s87 = sphi 0, %s86
      %s103 = sphi 0, %s87
      %s111 = sphi 0, %s113
      %s114 = sphi 0, %s111
      %s115 = sphi 0, %s114
      %s131 = sphi 0, %s115
      %s135 = sphi 0, %s135
      %s137 = sphi 0, %s135
      %s138 = sphi 0, %s137
      %s152 = sphi 0, %s138
      %s156 = sphi 0, %s156
      %s158 = sphi 0, %s156
      %s159 = sphi 0, %s158
      %s173 = sphi 0, %s159
      %s177 = sphi 0, %s177
      %s179 = sphi 0, %s177
      %s180 = sphi 0, %s179
      %s194 = sphi 0, %s180
      %s198 = sphi 0, %s198
      %s200 = sphi 0, %s198
      %s201 = sphi 0, %s200
      %s215 = sphi 0, %s201
      %s219 = sphi 0, %s219
      %s221 = sphi 0, %s219
      %s222 = sphi 0, %s221
      %s236 = sphi 0, %s222
      %s240 = sphi 0, %s240
      %s242 = sphi 0, %s240
      %s243 = sphi 0, %s242
      %s257 = sphi 0, %s243
      %s261 = sphi 0, %s261
      %s263 = sphi 0, %s261
      %s264 = sphi 0, %s263
      %s278 = sphi 0, %s264
      %s282 = sphi 0, %s282
      %s284 = sphi 0, %s282
      %s285 = sphi 0, %s284
      %s299 = sphi 0, %s285
      %s307 = sphi 0, %s309
      %s310 = sphi 0, %s307
      %s311 = sphi 0, %s310
      %s327 = sphi 0, %s311
      %s335 = sphi 0, %s337
      %s338 = sphi 0, %s335
      %s339 = sphi 0, %s338
      %s355 = sphi 0, %s339
    $region4: #{tpu_custom_call.1} parent=1 // loop_header_branch
      %36 = sbr.rel (%p34) target = $region8
    $region5: #{tpu_custom_call.1} parent=1 // loop_body
      %s38 = ssub.s32 %s33, 1
      %s39 = ssub.s32 %s33, 2
      %s46 = sadd.s32 1, %s41
      %p47 = scmp.ge.s32.totalorder %s46, 1
      %s48 = scalar_select %p47, 0, %s46
      %s49 = sadd.s32 1, %s40
      %s50 = scalar_select %p47, %s49, %s40
      %p51 = scmp.ge.s32.totalorder %s50, 2
      %s52 = scalar_select %p51, 0, %s50
      %s53 = ssub.s32 %s40, %s52
      %s54 = ssub.s32 %s41, %s48
      %s55 = sor.u32 %s53, %s54
      %p56 = scmp.eq.s32.totalorder %s55, 0
      %s58 = sadd.s32 %s57, 1
      %s59 = scalar_select %p56, %s57, %s58
      %p62 = pneg %p56
      %p63 = scmp.eq.s32.totalorder %s33, 1
      %p64 = por %p62, %p63
      %p65 = scmp.ne.s32.totalorder %s57, %s60
      %p66 = scmp.eq.s32.totalorder %s33, 0
      %p67 = por %p65, %p66
      %p68 = scmp.ne.s32.totalorder %s57, %s60
      %p69 = scmp.eq.s32.totalorder %s38, 1
      %p70 = por %p68, %p69
      %p71 = scmp.ne.s32.totalorder %s60, %s61
      %p72 = scmp.eq.s32.totalorder %s38, 0
      %p73 = por %p71, %p72
      %p74 = scmp.ne.s32.totalorder %s60, %s61
      %p75 = scmp.eq.s32.totalorder %s39, 1
      %p76 = por %p74, %p75
      %p78 = scmp.ne.s32.totalorder %s61, %s77
      %p79 = scmp.eq.s32.totalorder %s39, 0
      %p80 = por %p78, %p79
      %s81 = ssub.s32 %s40, %s52
      %p82 = scmp.eq.s32.totalorder %s81, 0
      %s84 = sadd.s32 %s83, 1
      %s85 = scalar_select %p82, %s83, %s84
      %p88 = pneg %p82
      %p89 = scmp.eq.s32.totalorder %s33, 1
      %p90 = por %p88, %p89
      %p91 = scmp.ne.s32.totalorder %s83, %s86
      %p92 = scmp.eq.s32.totalorder %s33, 0
      %p93 = por %p91, %p92
      %p94 = scmp.ne.s32.totalorder %s83, %s86
      %p95 = scmp.eq.s32.totalorder %s38, 1
      %p96 = por %p94, %p95
      %p97 = scmp.ne.s32.totalorder %s86, %s87
      %p98 = scmp.eq.s32.totalorder %s38, 0
      %p99 = por %p97, %p98
      %p100 = scmp.ne.s32.totalorder %s86, %s87
      %p101 = scmp.eq.s32.totalorder %s39, 1
      %p102 = por %p100, %p101
      %p104 = scmp.ne.s32.totalorder %s87, %s103
      %p105 = scmp.eq.s32.totalorder %s39, 0
      %p106 = por %p104, %p105
      %s107 = ssub.s32 %s40, %s52
      %s108 = ssub.s32 %s41, %s48
      %s109 = sor.u32 %s107, %s108
      %p110 = scmp.eq.s32.totalorder %s109, 0
      %s112 = sadd.s32 %s111, 1
      %s113 = scalar_select %p110, %s111, %s112
      %p116 = pneg %p110
      %p117 = scmp.eq.s32.totalorder %s33, 1
      %p118 = por %p116, %p117
      %p119 = scmp.ne.s32.totalorder %s111, %s114
      %p120 = scmp.eq.s32.totalorder %s33, 0
      %p121 = por %p119, %p120
      %p122 = scmp.ne.s32.totalorder %s111, %s114
      %p123 = scmp.eq.s32.totalorder %s38, 1
      %p124 = por %p122, %p123
      %p125 = scmp.ne.s32.totalorder %s114, %s115
      %p126 = scmp.eq.s32.totalorder %s38, 0
      %p127 = por %p125, %p126
      %p128 = scmp.ne.s32.totalorder %s114, %s115
      %p129 = scmp.eq.s32.totalorder %s39, 1
      %p130 = por %p128, %p129
      %p132 = scmp.ne.s32.totalorder %s115, %s131
      %p133 = scmp.eq.s32.totalorder %s39, 0
      %p134 = por %p132, %p133
      %s136 = sadd.s32 %s135, 1
      %p139 = scmp.eq.s32.totalorder %s33, 1
      %p140 = scmp.ne.s32.totalorder %s135, %s137
      %p141 = scmp.eq.s32.totalorder %s33, 0
      %p142 = por %p140, %p141
      %p143 = scmp.ne.s32.totalorder %s135, %s137
      %p144 = scmp.eq.s32.totalorder %s38, 1
      %p145 = por %p143, %p144
      %p146 = scmp.ne.s32.totalorder %s137, %s138
      %p147 = scmp.eq.s32.totalorder %s38, 0
      %p148 = por %p146, %p147
      %p149 = scmp.ne.s32.totalorder %s137, %s138
      %p150 = scmp.eq.s32.totalorder %s39, 1
      %p151 = por %p149, %p150
      %p153 = scmp.ne.s32.totalorder %s138, %s152
      %p154 = scmp.eq.s32.totalorder %s39, 0
      %p155 = por %p153, %p154
      %s157 = sadd.s32 %s156, 1
      %p160 = scmp.eq.s32.totalorder %s33, 1
      %p161 = scmp.ne.s32.totalorder %s156, %s158
      %p162 = scmp.eq.s32.totalorder %s33, 0
      %p163 = por %p161, %p162
      %p164 = scmp.ne.s32.totalorder %s156, %s158
      %p165 = scmp.eq.s32.totalorder %s38, 1
      %p166 = por %p164, %p165
      %p167 = scmp.ne.s32.totalorder %s158, %s159
      %p168 = scmp.eq.s32.totalorder %s38, 0
      %p169 = por %p167, %p168
      %p170 = scmp.ne.s32.totalorder %s158, %s159
      %p171 = scmp.eq.s32.totalorder %s39, 1
      %p172 = por %p170, %p171
      %p174 = scmp.ne.s32.totalorder %s159, %s173
      %p175 = scmp.eq.s32.totalorder %s39, 0
      %p176 = por %p174, %p175
      %s178 = sadd.s32 %s177, 1
      %p181 = scmp.eq.s32.totalorder %s33, 1
      %p182 = scmp.ne.s32.totalorder %s177, %s179
      %p183 = scmp.eq.s32.totalorder %s33, 0
      %p184 = por %p182, %p183
      %p185 = scmp.ne.s32.totalorder %s177, %s179
      %p186 = scmp.eq.s32.totalorder %s38, 1
      %p187 = por %p185, %p186
      %p188 = scmp.ne.s32.totalorder %s179, %s180
      %p189 = scmp.eq.s32.totalorder %s38, 0
      %p190 = por %p188, %p189
      %p191 = scmp.ne.s32.totalorder %s179, %s180
      %p192 = scmp.eq.s32.totalorder %s39, 1
      %p193 = por %p191, %p192
      %p195 = scmp.ne.s32.totalorder %s180, %s194
      %p196 = scmp.eq.s32.totalorder %s39, 0
      %p197 = por %p195, %p196
      %s199 = sadd.s32 %s198, 1
      %p202 = scmp.eq.s32.totalorder %s33, 1
      %p203 = scmp.ne.s32.totalorder %s198, %s200
      %p204 = scmp.eq.s32.totalorder %s33, 0
      %p205 = por %p203, %p204
      %p206 = scmp.ne.s32.totalorder %s198, %s200
      %p207 = scmp.eq.s32.totalorder %s38, 1
      %p208 = por %p206, %p207
      %p209 = scmp.ne.s32.totalorder %s200, %s201
      %p210 = scmp.eq.s32.totalorder %s38, 0
      %p211 = por %p209, %p210
      %p212 = scmp.ne.s32.totalorder %s200, %s201
      %p213 = scmp.eq.s32.totalorder %s39, 1
      %p214 = por %p212, %p213
      %p216 = scmp.ne.s32.totalorder %s201, %s215
      %p217 = scmp.eq.s32.totalorder %s39, 0
      %p218 = por %p216, %p217
      %s220 = sadd.s32 %s219, 1
      %p223 = scmp.eq.s32.totalorder %s33, 1
      %p224 = scmp.ne.s32.totalorder %s219, %s221
      %p225 = scmp.eq.s32.totalorder %s33, 0
      %p226 = por %p224, %p225
      %p227 = scmp.ne.s32.totalorder %s219, %s221
      %p228 = scmp.eq.s32.totalorder %s38, 1
      %p229 = por %p227, %p228
      %p230 = scmp.ne.s32.totalorder %s221, %s222
      %p231 = scmp.eq.s32.totalorder %s38, 0
      %p232 = por %p230, %p231
      %p233 = scmp.ne.s32.totalorder %s221, %s222
      %p234 = scmp.eq.s32.totalorder %s39, 1
      %p235 = por %p233, %p234
      %p237 = scmp.ne.s32.totalorder %s222, %s236
      %p238 = scmp.eq.s32.totalorder %s39, 0
      %p239 = por %p237, %p238
      %s241 = sadd.s32 %s240, 1
      %p244 = scmp.eq.s32.totalorder %s33, 1
      %p245 = scmp.ne.s32.totalorder %s240, %s242
      %p246 = scmp.eq.s32.totalorder %s33, 0
      %p247 = por %p245, %p246
      %p248 = scmp.ne.s32.totalorder %s240, %s242
      %p249 = scmp.eq.s32.totalorder %s38, 1
      %p250 = por %p248, %p249
      %p251 = scmp.ne.s32.totalorder %s242, %s243
      %p252 = scmp.eq.s32.totalorder %s38, 0
      %p253 = por %p251, %p252
      %p254 = scmp.ne.s32.totalorder %s242, %s243
      %p255 = scmp.eq.s32.totalorder %s39, 1
      %p256 = por %p254, %p255
      %p258 = scmp.ne.s32.totalorder %s243, %s257
      %p259 = scmp.eq.s32.totalorder %s39, 0
      %p260 = por %p258, %p259
      %s262 = sadd.s32 %s261, 1
      %p265 = scmp.eq.s32.totalorder %s33, 1
      %p266 = scmp.ne.s32.totalorder %s261, %s263
      %p267 = scmp.eq.s32.totalorder %s33, 0
      %p268 = por %p266, %p267
      %p269 = scmp.ne.s32.totalorder %s261, %s263
      %p270 = scmp.eq.s32.totalorder %s38, 1
      %p271 = por %p269, %p270
      %p272 = scmp.ne.s32.totalorder %s263, %s264
      %p273 = scmp.eq.s32.totalorder %s38, 0
      %p274 = por %p272, %p273
      %p275 = scmp.ne.s32.totalorder %s263, %s264
      %p276 = scmp.eq.s32.totalorder %s39, 1
      %p277 = por %p275, %p276
      %p279 = scmp.ne.s32.totalorder %s264, %s278
      %p280 = scmp.eq.s32.totalorder %s39, 0
      %p281 = por %p279, %p280
      %s283 = sadd.s32 %s282, 1
      %p286 = scmp.eq.s32.totalorder %s33, 1
      %p287 = scmp.ne.s32.totalorder %s282, %s284
      %p288 = scmp.eq.s32.totalorder %s33, 0
      %p289 = por %p287, %p288
      %p290 = scmp.ne.s32.totalorder %s282, %s284
      %p291 = scmp.eq.s32.totalorder %s38, 1
      %p292 = por %p290, %p291
      %p293 = scmp.ne.s32.totalorder %s284, %s285
      %p294 = scmp.eq.s32.totalorder %s38, 0
      %p295 = por %p293, %p294
      %p296 = scmp.ne.s32.totalorder %s284, %s285
      %p297 = scmp.eq.s32.totalorder %s39, 1
      %p298 = por %p296, %p297
      %p300 = scmp.ne.s32.totalorder %s285, %s299
      %p301 = scmp.eq.s32.totalorder %s39, 0
      %p302 = por %p300, %p301
      %s303 = ssub.s32 %s40, %s52
      %s304 = ssub.s32 %s41, %s48
      %s305 = sor.u32 %s303, %s304
      %p306 = scmp.eq.s32.totalorder %s305, 0
      %s308 = sadd.s32 %s307, 1
      %s309 = scalar_select %p306, %s307, %s308
      %p312 = pneg %p306
      %p313 = scmp.eq.s32.totalorder %s33, 1
      %p314 = por %p312, %p313
      %p315 = scmp.ne.s32.totalorder %s307, %s310
      %p316 = scmp.eq.s32.totalorder %s33, 0
      %p317 = por %p315, %p316
      %p318 = scmp.ne.s32.totalorder %s307, %s310
      %p319 = scmp.eq.s32.totalorder %s38, 1
      %p320 = por %p318, %p319
      %p321 = scmp.ne.s32.totalorder %s310, %s311
      %p322 = scmp.eq.s32.totalorder %s38, 0
      %p323 = por %p321, %p322
      %p324 = scmp.ne.s32.totalorder %s310, %s311
      %p325 = scmp.eq.s32.totalorder %s39, 1
      %p326 = por %p324, %p325
      %p328 = scmp.ne.s32.totalorder %s311, %s327
      %p329 = scmp.eq.s32.totalorder %s39, 0
      %p330 = por %p328, %p329
      %s331 = ssub.s32 %s40, %s52
      %s332 = ssub.s32 %s41, %s48
      %s333 = sor.u32 %s331, %s332
      %p334 = scmp.eq.s32.totalorder %s333, 0
      %s336 = sadd.s32 %s335, 1
      %s337 = scalar_select %p334, %s335, %s336
      %p340 = pneg %p334
      %p341 = scmp.eq.s32.totalorder %s33, 1
      %p342 = por %p340, %p341
      %p343 = scmp.ne.s32.totalorder %s335, %s338
      %p344 = scmp.eq.s32.totalorder %s33, 0
      %p345 = por %p343, %p344
      %p346 = scmp.ne.s32.totalorder %s335, %s338
      %p347 = scmp.eq.s32.totalorder %s38, 1
      %p348 = por %p346, %p347
      %p349 = scmp.ne.s32.totalorder %s338, %s339
      %p350 = scmp.eq.s32.totalorder %s38, 0
      %p351 = por %p349, %p350
      %p352 = scmp.ne.s32.totalorder %s338, %s339
      %p353 = scmp.eq.s32.totalorder %s39, 1
      %p354 = por %p352, %p353
      %p356 = scmp.ne.s32.totalorder %s339, %s355
      %p357 = scmp.eq.s32.totalorder %s39, 0
      %p358 = por %p356, %p357
      %p359 = scmp.le.s32.totalorder 1, %s33
      %p360 = scmp.lt.s32.totalorder %s33, 3
      %p361 = pnand %p359, %p360
      %p362 = pneg %p361
      // Predicated region
      $region9: #{tpu_custom_call.1} parent=5 // pred_check
        _
      $region10: #{tpu_custom_call.1} parent=5 // pred_check_branch
        %364 = sbr.rel (%p361) target = $region12
      $region11: #{tpu_custom_call.1} parent=5 // pred_region
        %s365 = ssub.s32 %s33, 1
        // Predicated region
        $region13: #{tpu_custom_call.1} parent=11 // pred_check
          %p366 = pneg %p148
        $region14: #{tpu_custom_call.1} parent=11 // pred_check_branch
          %368 = sbr.rel (%p366) target = $region16
        $region15: #{tpu_custom_call.1} parent=11 // pred_region
          %s370 = ssub.s32 512, 512
          %371 = vsyncadd [#allocation13], %s370
          %s372 = sshll.u32 [#allocation12], 4
          %s373 = int_to_ptr.vmem [resolvable:$true] %s372
          %378 = dma.hbm_to_vmem [thread:$0]  %s3, 512, %s373, [#allocation13], 128, 128, 8
        $region16: #{tpu_custom_call.1} parent=11 // pred_fallthru
          _
        // Predicated region
        $region17: #{tpu_custom_call.1} parent=11 // pred_check
          %p379 = pneg %p169
        $region18: #{tpu_custom_call.1} parent=11 // pred_check_branch
          %381 = sbr.rel (%p379) target = $region20
        $region19: #{tpu_custom_call.1} parent=11 // pred_region
          _
        $region20: #{tpu_custom_call.1} parent=11 // pred_fallthru
          _
        // Predicated region
        $region21: #{tpu_custom_call.1} parent=11 // pred_check
          %p382 = pneg %p190
        $region22: #{tpu_custom_call.1} parent=11 // pred_check_branch
          %384 = sbr.rel (%p382) target = $region24
        $region23: #{tpu_custom_call.1} parent=11 // pred_region
          %s386 = ssub.s32 512, 512
          %387 = vsyncadd [#allocation13], %s386
          %s388 = sshll.u32 [#allocation14], 4
          %s389 = int_to_ptr.vmem [resolvable:$true] %s388
          %394 = dma.hbm_to_vmem [thread:$0]  %s5, 512, %s389, [#allocation13], 128, 128, 8
        $region24: #{tpu_custom_call.1} parent=11 // pred_fallthru
          _
        // Predicated region
        $region25: #{tpu_custom_call.1} parent=11 // pred_check
          %p395 = pneg %p211
        $region26: #{tpu_custom_call.1} parent=11 // pred_check_branch
          %397 = sbr.rel (%p395) target = $region28
        $region27: #{tpu_custom_call.1} parent=11 // pred_region
          _
        $region28: #{tpu_custom_call.1} parent=11 // pred_fallthru
          _
        // Predicated region
        $region29: #{tpu_custom_call.1} parent=11 // pred_check
          %p398 = pneg %p232
        $region30: #{tpu_custom_call.1} parent=11 // pred_check_branch
          %400 = sbr.rel (%p398) target = $region32
        $region31: #{tpu_custom_call.1} parent=11 // pred_region
          %s402 = ssub.s32 512, 512
          %403 = vsyncadd [#allocation16], %s402
          %s404 = sshll.u32 [#allocation15], 4
          %s405 = int_to_ptr.vmem [resolvable:$true] %s404
          %410 = dma.hbm_to_vmem [thread:$0]  %s7, 512, %s405, [#allocation16], 128, 128, 8
        $region32: #{tpu_custom_call.1} parent=11 // pred_fallthru
          _
        // Predicated region
        $region33: #{tpu_custom_call.1} parent=11 // pred_check
          %p411 = pneg %p253
        $region34: #{tpu_custom_call.1} parent=11 // pred_check_branch
          %413 = sbr.rel (%p411) target = $region36
        $region35: #{tpu_custom_call.1} parent=11 // pred_region
          _
        $region36: #{tpu_custom_call.1} parent=11 // pred_fallthru
          _
        // Predicated region
        $region37: #{tpu_custom_call.1} parent=11 // pred_check
          %p414 = pneg %p274
        $region38: #{tpu_custom_call.1} parent=11 // pred_check_branch
          %416 = sbr.rel (%p414) target = $region40
        $region39: #{tpu_custom_call.1} parent=11 // pred_region
          _
        $region40: #{tpu_custom_call.1} parent=11 // pred_fallthru
          _
        // Predicated region
        $region41: #{tpu_custom_call.1} parent=11 // pred_check
          %p417 = pneg %p295
        $region42: #{tpu_custom_call.1} parent=11 // pred_check_branch
          %419 = sbr.rel (%p417) target = $region44
        $region43: #{tpu_custom_call.1} parent=11 // pred_region
          _
        $region44: #{tpu_custom_call.1} parent=11 // pred_fallthru
          _
      $region12: #{tpu_custom_call.1} parent=5 // pred_fallthru
        _
      %p420 = scmp.lt.s32.totalorder %s33, 2
      // Predicated region
      $region45: #{tpu_custom_call.1} parent=5 // pred_check
        %p421 = pneg %p420
      $region46: #{tpu_custom_call.1} parent=5 // pred_check_branch
        %423 = sbr.rel (%p421) target = $region48
      $region47: #{tpu_custom_call.1} parent=5 // pred_region
        // Predicated region
        $region49: #{tpu_custom_call.1} parent=47 // pred_check
          %p424 = pneg %p67
        $region50: #{tpu_custom_call.1} parent=47 // pred_check_branch
          %426 = sbr.rel (%p424) target = $region52
        $region51: #{tpu_custom_call.1} parent=47 // pred_region
          %s427 = sand.u32 %s57, 1
          %s428 = scalar_lea.sflag [#allocation7], %s427
          %s429 = sand.u32 %s57, 1
          %s430 = smul.addr %s429, 8
          %s431 = scalar_lea.vmem [#allocation6], %s430
          %s433 = ssub.s32 128, 128
          %434 = vsyncadd %s428, %s433
          %s435 = sadd.s32 %s41, %s40
          %s436 = smul.addr %s435, 128
          %s437 = scalar_lea.hbm %s0, %s436
          %s439 = sshll.u32 %s431, 4
          %s440 = int_to_ptr.vmem [resolvable:$true] %s439
          %442 = dma.hbm_to_vmem [thread:$0]  %s437, 128, %s440, %s428
        $region52: #{tpu_custom_call.1} parent=47 // pred_fallthru
          _
        // Predicated region
        $region53: #{tpu_custom_call.1} parent=47 // pred_check
          %p443 = pneg %p93
        $region54: #{tpu_custom_call.1} parent=47 // pred_check_branch
          %445 = sbr.rel (%p443) target = $region56
        $region55: #{tpu_custom_call.1} parent=47 // pred_region
          %s446 = sand.u32 %s33, 1
          %s447 = scalar_lea.sflag [#allocation10], %s446
          %s448 = sand.u32 %s83, 1
          %s449 = smul.addr %s448, 8
          %s450 = scalar_lea.vmem [#allocation9], %s449
          %s452 = ssub.s32 128, 128
          %453 = vsyncadd %s447, %s452
          %s454 = smul.addr %s40, 128
          %s455 = scalar_lea.hbm %s1, %s454
          %s457 = sshll.u32 %s450, 4
          %s458 = int_to_ptr.vmem [resolvable:$true] %s457
          %460 = dma.hbm_to_vmem [thread:$0]  %s455, 128, %s458, %s447
        $region56: #{tpu_custom_call.1} parent=47 // pred_fallthru
          _
        // Predicated region
        $region57: #{tpu_custom_call.1} parent=47 // pred_check
          %p461 = pneg %p121
        $region58: #{tpu_custom_call.1} parent=47 // pred_check_branch
          %463 = sbr.rel (%p461) target = $region60
        $region59: #{tpu_custom_call.1} parent=47 // pred_region
          %s464 = sand.u32 %s33, 1
          %s465 = scalar_lea.sflag [#allocation10], %s464
          %s466 = sand.u32 %s111, 1
          %s467 = smul.addr %s466, 8
          %s468 = scalar_lea.vmem [#allocation11], %s467
          %s470 = ssub.s32 128, 128
          %471 = vsyncadd %s465, %s470
          %s472 = sadd.s32 %s41, %s40
          %s473 = smul.addr %s472, 128
          %s474 = scalar_lea.hbm %s2, %s473
          %s476 = sshll.u32 %s468, 4
          %s477 = int_to_ptr.vmem [resolvable:$true] %s476
          %479 = dma.hbm_to_vmem [thread:$0]  %s474, 128, %s477, %s465
        $region60: #{tpu_custom_call.1} parent=47 // pred_fallthru
          _
      $region48: #{tpu_custom_call.1} parent=5 // pred_fallthru
        _
      %p480 = scmp.le.s32.totalorder 1, %s33
      %p481 = scmp.lt.s32.totalorder %s33, 3
      %p482 = pnand %p480, %p481
      %p483 = pneg %p482
      // Predicated region
      $region61: #{tpu_custom_call.1} parent=5 // pred_check
        _
      $region62: #{tpu_custom_call.1} parent=5 // pred_check_branch
        %485 = sbr.rel (%p482) target = $region64
      $region63: #{tpu_custom_call.1} parent=5 // pred_region
        %s486 = ssub.s32 %s33, 1
        %s487 = sand.u32 %s60, 1
        %s488 = scalar_lea.sflag [#allocation7], %s487
        %s489 = sand.u32 %s60, 1
        %s490 = smul.addr %s489, 8
        %s491 = scalar_lea.vmem [#allocation6], %s490
        // Predicated region
        $region65: #{tpu_custom_call.1} parent=63 // pred_check
          %p492 = pneg %p73
        $region66: #{tpu_custom_call.1} parent=63 // pred_check_branch
          %494 = sbr.rel (%p492) target = $region68
        $region67: #{tpu_custom_call.1} parent=63 // pred_region
          %495 = dma.done %s488, 128
        $region68: #{tpu_custom_call.1} parent=63 // pred_fallthru
          _
        %s496 = sand.u32 %s38, 1
        %s497 = scalar_lea.sflag [#allocation10], %s496
        %s498 = sand.u32 %s86, 1
        %s499 = smul.addr %s498, 8
        %s500 = scalar_lea.vmem [#allocation9], %s499
        // Predicated region
        $region69: #{tpu_custom_call.1} parent=63 // pred_check
          %p501 = pneg %p99
        $region70: #{tpu_custom_call.1} parent=63 // pred_check_branch
          %503 = sbr.rel (%p501) target = $region72
        $region71: #{tpu_custom_call.1} parent=63 // pred_region
          %504 = dma.done %s497, 128
        $region72: #{tpu_custom_call.1} parent=63 // pred_fallthru
          _
        %s505 = sand.u32 %s38, 1
        %s506 = scalar_lea.sflag [#allocation10], %s505
        %s507 = sand.u32 %s114, 1
        %s508 = smul.addr %s507, 8
        %s509 = scalar_lea.vmem [#allocation11], %s508
        // Predicated region
        $region73: #{tpu_custom_call.1} parent=63 // pred_check
          %p510 = pneg %p127
        $region74: #{tpu_custom_call.1} parent=63 // pred_check_branch
          %512 = sbr.rel (%p510) target = $region76
        $region75: #{tpu_custom_call.1} parent=63 // pred_region
          %513 = dma.done %s506, 128
        $region76: #{tpu_custom_call.1} parent=63 // pred_fallthru
          _
        // Predicated region
        $region77: #{tpu_custom_call.1} parent=63 // pred_check
          %p514 = pneg %p148
        $region78: #{tpu_custom_call.1} parent=63 // pred_check_branch
          %516 = sbr.rel (%p514) target = $region80
        $region79: #{tpu_custom_call.1} parent=63 // pred_region
          %517 = dma.done [#allocation13], 512
        $region80: #{tpu_custom_call.1} parent=63 // pred_fallthru
          _
        // Predicated region
        $region81: #{tpu_custom_call.1} parent=63 // pred_check
          %p518 = pneg %p190
        $region82: #{tpu_custom_call.1} parent=63 // pred_check_branch
          %520 = sbr.rel (%p518) target = $region84
        $region83: #{tpu_custom_call.1} parent=63 // pred_region
          %521 = dma.done [#allocation13], 512
        $region84: #{tpu_custom_call.1} parent=63 // pred_fallthru
          _
        // Predicated region
        $region85: #{tpu_custom_call.1} parent=63 // pred_check
          %p522 = pneg %p232
        $region86: #{tpu_custom_call.1} parent=63 // pred_check_branch
          %524 = sbr.rel (%p522) target = $region88
        $region87: #{tpu_custom_call.1} parent=63 // pred_region
          %525 = dma.done [#allocation16], 512
        $region88: #{tpu_custom_call.1} parent=63 // pred_fallthru
          _
        %s526 = sand.u32 %s60, 1
        %s527 = scalar_lea.sflag [#allocation7], %s526
        %s528 = sand.u32 %s60, 1
        %s529 = smul.addr %s528, 8
        %s530 = scalar_lea.vmem [#allocation6], %s529
        %p531 = pneg %p73
        %p532 = pneg %p70
        %s533 = sand.u32 %s38, 1
        %s534 = scalar_lea.sflag [#allocation10], %s533
        %s535 = sand.u32 %s86, 1
        %s536 = smul.addr %s535, 8
        %s537 = scalar_lea.vmem [#allocation9], %s536
        %p538 = pneg %p99
        %p539 = pneg %p96
        %s540 = sand.u32 %s38, 1
        %s541 = scalar_lea.sflag [#allocation10], %s540
        %s542 = sand.u32 %s114, 1
        %s543 = smul.addr %s542, 8
        %s544 = scalar_lea.vmem [#allocation11], %s543
        %p545 = pneg %p127
        %p546 = pneg %p124
        %p547 = pneg %p148
        %p548 = pneg %p145
        %p549 = pneg %p169
        %p550 = pneg %p166
        %p551 = pneg %p190
        %p552 = pneg %p187
        %p553 = pneg %p211
        %p554 = pneg %p208
        %p555 = pneg %p232
        %p556 = pneg %p229
        %p557 = pneg %p253
        %p558 = pneg %p250
        %p559 = pneg %p274
        %p560 = pneg %p271
        %p561 = pneg %p295
        %p562 = pneg %p292
        %p563 = pneg %p323
        %p564 = pneg %p320
        %s565 = sand.u32 %s310, 1
        %s566 = scalar_lea.sflag [#allocation8], %s565
        %s567 = sand.u32 %s310, 1
        %s568 = smul.addr %s567, 8
        %s569 = scalar_lea.vmem [#allocation17], %s568
        %p570 = pneg %p351
        %p571 = pneg %p348
        %s572 = sand.u32 %s338, 1
        %s573 = scalar_lea.sflag [#allocation19], %s572
        %s574 = sand.u32 %s338, 1
        %s575 = smul.addr %s574, 32
        %s576 = scalar_lea.vmem [#allocation18], %s575
        %p577 = scmp.eq.s32.totalorder %s43, 0
        // Predicated region
        $region89: #{tpu_custom_call.1} parent=63 // pred_check
          %p578 = pneg %p577
        $region90: #{tpu_custom_call.1} parent=63 // pred_check_branch
          %580 = sbr.rel (%p578) target = $region92
        $region91: #{tpu_custom_call.1} parent=63 // pred_region
          %v581 = vld [vmem:[%s500] sm:$0xff]
          %v582 = vld [vmem:[#allocation14] sm:$0xff]
          %v583 = vld [vmem:[#allocation14 + $0x8] sm:$0xff]
          %v584 = vld [vmem:[#allocation14 + $0x10] sm:$0xff]
          %v585 = vld [vmem:[#allocation14 + $0x18] sm:$0xff]
          %v586 = vld [vmem:[%s6] sm:$0x1]
          %v588 = vlaneseq
          %v589 = vshrl.u32 %v588, 7
          %v590 = vsub.s32 0, %v589
          %v591 = vrot.slane %v586, %v590
          %vm593 = vcmask 261120
          %v595 = vsel %vm593, %v581, 0
          %597 = vmatprep.subr.mxu0 0.0
          %598 = vmatpush1.msra.mxu0 %v582
          %599 = vmatprep.subr.mxu0 0.0
          %600 = vmatpush1.msra.mxu0 %v583
          %601 = vmatprep.subr.mxu0 0.0
          %602 = vmatpush1.msra.mxu0 %v584
          %603 = vmatprep.subr.mxu0 0.0
          %604 = vmatpush1.msra.mxu0 %v585
          %605 = vmatprep.subr.mxu0 0.0
          %606 = vmatpush1.msra.mxu0 0.0
          %607 = vmatprep.subr.mxu0 0.0
          %608 = vmatpush1.msra.mxu0 0.0
          %609 = vmatprep.subr.mxu0 0.0
          %610 = vmatpush1.msra.mxu0 0.0
          %611 = vmatprep.subr.mxu0 0.0
          %612 = vmatpush1.msra.mxu0 0.0
          %613 = vmatprep.subr.mxu0 0.0
          %614 = vmatpush1.msra.mxu0 0.0
          %615 = vmatprep.subr.mxu0 0.0
          %616 = vmatpush1.msra.mxu0 0.0
          %617 = vmatprep.subr.mxu0 0.0
          %618 = vmatpush1.msra.mxu0 0.0
          %619 = vmatprep.subr.mxu0 0.0
          %620 = vmatpush1.msra.mxu0 0.0
          %621 = vmatprep.subr.mxu0 0.0
          %622 = vmatpush1.msra.mxu0 0.0
          %623 = vmatprep.subr.mxu0 0.0
          %624 = vmatpush1.msra.mxu0 0.0
          %625 = vmatprep.subr.mxu0 0.0
          %626 = vmatpush1.msra.mxu0 0.0
          %627 = vmatprep.subr.mxu0 0.0
          %628 = vmatpush1.msra.mxu0 0.0
          %629 = vmatprep.subr.mxu0 0.0
          %630 = vmatpush1.msra.mxu0 0.0
          %631 = vmatprep.subr.mxu0 0.0
          %632 = vmatpush1.msra.mxu0 0.0
          %633 = vmatprep.subr.mxu0 0.0
          %634 = vmatpush1.msra.mxu0 0.0
          %635 = vmatprep.subr.mxu0 0.0
          %636 = vmatpush1.msra.mxu0 0.0
          %637 = vmatprep.subr.mxu0 0.0
          %638 = vmatpush1.msra.mxu0 0.0
          %639 = vmatprep.subr.mxu0 0.0
          %640 = vmatpush1.msra.mxu0 0.0
          %641 = vmatprep.subr.mxu0 0.0
          %642 = vmatpush1.msra.mxu0 0.0
          %643 = vmatprep.subr.mxu0 0.0
          %644 = vmatpush1.msra.mxu0 0.0
          %645 = vmatprep.subr.mxu0 0.0
          %646 = vmatpush1.msra.mxu0 0.0
          %647 = vmatprep.subr.mxu0 0.0
          %648 = vmatpush1.msra.mxu0 0.0
          %649 = vmatprep.subr.mxu0 0.0
          %650 = vmatpush1.msra.mxu0 0.0
          %651 = vmatprep.subr.mxu0 0.0
          %652 = vmatpush1.msra.mxu0 0.0
          %653 = vmatprep.subr.mxu0 0.0
          %654 = vmatpush1.msra.mxu0 0.0
          %655 = vmatprep.subr.mxu0 0.0
          %656 = vmatpush1.msra.mxu0 0.0
          %657 = vmatprep.subr.mxu0 0.0
          %658 = vmatpush1.msra.mxu0 0.0
          %659 = vmatprep.subr.mxu0 0.0
          %660 = vmatpush1.msra.mxu0 0.0
          %661 = vmatprep.mubr.f32.mxu0 0.0
          %662 = vmatmul.mubr.f32.gmra.mrb[0].mxu0 %v595
          %v663 = vpop.f32.mrb[0].mxu0
          %v664 = vadd.f32 %v591, %v663
          %v665 = vpop.f32.mrb[0].mxu0
          %666 = vdwg.mxu0
          %vm667 = vcmask 64512
          %668 = vst.msk [vmem:[#allocation3] sm:$0xff] %vm667, %v664
          %670 = vrot.lane.b32.xlu0 %v664, 96
          %v671 = vpop.permute.xlu0 %670
          %673 = vst.msk [vmem:[#allocation4] sm:$0xff] %vm667, %v671
          %674 = vrot.lane.b32.xlu0 %v664, 120
          %v675 = vpop.permute.xlu0 %674
          %s677 = scalar_lea.vmem [#allocation3], 8
          %678 = vst.msk [vmem:[%s677] sm:$0xff] %vm667, %v675
          %679 = vrot.lane.b32.xlu0 %v664, 88
          %v680 = vpop.permute.xlu0 %679
          %s682 = scalar_lea.vmem [#allocation4], 8
          %683 = vst.msk [vmem:[%s682] sm:$0xff] %vm667, %v680
          %684 = vrot.lane.b32.xlu0 %v664, 112
          %v685 = vpop.permute.xlu0 %684
          %s687 = scalar_lea.vmem [#allocation3], 16
          %688 = vst.msk [vmem:[%s687] sm:$0xff] %vm667, %v685
          %689 = vrot.lane.b32.xlu0 %v664, 80
          %v690 = vpop.permute.xlu0 %689
          %s692 = scalar_lea.vmem [#allocation4], 16
          %693 = vst.msk [vmem:[%s692] sm:$0xff] %vm667, %v690
          %694 = vrot.lane.b32.xlu0 %v664, 104
          %v695 = vpop.permute.xlu0 %694
          %s697 = scalar_lea.vmem [#allocation3], 24
          %698 = vst.msk [vmem:[%s697] sm:$0xff] %vm667, %v695
          %699 = vrot.lane.b32.xlu0 %v664, 72
          %v700 = vpop.permute.xlu0 %699
          %s702 = scalar_lea.vmem [#allocation4], 24
          %703 = vst.msk [vmem:[%s702] sm:$0xff] %vm667, %v700
        $region92: #{tpu_custom_call.1} parent=63 // pred_fallthru
          _
        %v704 = vld [vmem:[%s491] sm:$0xff]
        %v705 = vld [vmem:[#allocation12] sm:$0xff]
        %v706 = vld [vmem:[#allocation12 + $0x8] sm:$0xff]
        %v707 = vld [vmem:[#allocation12 + $0x10] sm:$0xff]
        %v708 = vld [vmem:[#allocation12 + $0x18] sm:$0xff]
        %v709 = vld [vmem:[%s4] sm:$0x1]
        %v711 = vlaneseq
        %v712 = vshrl.u32 %v711, 7
        %v713 = vsub.s32 0, %v712
        %v714 = vrot.slane %v709, %v713
        %vm716 = vcmask 261120
        %v718 = vsel %vm716, %v704, 0
        %720 = vmatprep.subr.mxu0 0.0
        %721 = vmatpush1.msra.mxu0 %v705
        %722 = vmatprep.subr.mxu0 0.0
        %723 = vmatpush1.msra.mxu0 %v706
        %724 = vmatprep.subr.mxu0 0.0
        %725 = vmatpush1.msra.mxu0 %v707
        %726 = vmatprep.subr.mxu0 0.0
        %727 = vmatpush1.msra.mxu0 %v708
        %728 = vmatprep.subr.mxu0 0.0
        %729 = vmatpush1.msra.mxu0 0.0
        %730 = vmatprep.subr.mxu0 0.0
        %731 = vmatpush1.msra.mxu0 0.0
        %732 = vmatprep.subr.mxu0 0.0
        %733 = vmatpush1.msra.mxu0 0.0
        %734 = vmatprep.subr.mxu0 0.0
        %735 = vmatpush1.msra.mxu0 0.0
        %736 = vmatprep.subr.mxu0 0.0
        %737 = vmatpush1.msra.mxu0 0.0
        %738 = vmatprep.subr.mxu0 0.0
        %739 = vmatpush1.msra.mxu0 0.0
        %740 = vmatprep.subr.mxu0 0.0
        %741 = vmatpush1.msra.mxu0 0.0
        %742 = vmatprep.subr.mxu0 0.0
        %743 = vmatpush1.msra.mxu0 0.0
        %744 = vmatprep.subr.mxu0 0.0
        %745 = vmatpush1.msra.mxu0 0.0
        %746 = vmatprep.subr.mxu0 0.0
        %747 = vmatpush1.msra.mxu0 0.0
        %748 = vmatprep.subr.mxu0 0.0
        %749 = vmatpush1.msra.mxu0 0.0
        %750 = vmatprep.subr.mxu0 0.0
        %751 = vmatpush1.msra.mxu0 0.0
        %752 = vmatprep.subr.mxu0 0.0
        %753 = vmatpush1.msra.mxu0 0.0
        %754 = vmatprep.subr.mxu0 0.0
        %755 = vmatpush1.msra.mxu0 0.0
        %756 = vmatprep.subr.mxu0 0.0
        %757 = vmatpush1.msra.mxu0 0.0
        %758 = vmatprep.subr.mxu0 0.0
        %759 = vmatpush1.msra.mxu0 0.0
        %760 = vmatprep.subr.mxu0 0.0
        %761 = vmatpush1.msra.mxu0 0.0
        %762 = vmatprep.subr.mxu0 0.0
        %763 = vmatpush1.msra.mxu0 0.0
        %764 = vmatprep.subr.mxu0 0.0
        %765 = vmatpush1.msra.mxu0 0.0
        %766 = vmatprep.subr.mxu0 0.0
        %767 = vmatpush1.msra.mxu0 0.0
        %768 = vmatprep.subr.mxu0 0.0
        %769 = vmatpush1.msra.mxu0 0.0
        %770 = vmatprep.subr.mxu0 0.0
        %771 = vmatpush1.msra.mxu0 0.0
        %772 = vmatprep.subr.mxu0 0.0
        %773 = vmatpush1.msra.mxu0 0.0
        %774 = vmatprep.subr.mxu0 0.0
        %775 = vmatpush1.msra.mxu0 0.0
        %776 = vmatprep.subr.mxu0 0.0
        %777 = vmatpush1.msra.mxu0 0.0
        %778 = vmatprep.subr.mxu0 0.0
        %779 = vmatpush1.msra.mxu0 0.0
        %780 = vmatprep.subr.mxu0 0.0
        %781 = vmatpush1.msra.mxu0 0.0
        %782 = vmatprep.subr.mxu0 0.0
        %783 = vmatpush1.msra.mxu0 0.0
        %784 = vmatprep.mubr.f32.mxu0 0.0
        %785 = vmatmul.mubr.f32.gmra.mrb[0].mxu0 %v718
        %v786 = vpop.f32.mrb[0].mxu0
        %v787 = vadd.f32 %v714, %v786
        %v788 = vpop.f32.mrb[0].mxu0
        %789 = vdwg.mxu0
        %v790 = vmul.f32 %v787, 0.35355338
        %vm791 = vcmask 64512
        %792 = vst.msk [vmem:[#allocation2] sm:$0xff] %vm791, %v790
        %794 = vrot.lane.b32.xlu0 %v790, 120
        %v795 = vpop.permute.xlu0 %794
        %s797 = scalar_lea.vmem [#allocation2], 8
        %798 = vst.msk [vmem:[%s797] sm:$0xff] %vm791, %v795
        %799 = vrot.lane.b32.xlu0 %v790, 112
        %v800 = vpop.permute.xlu0 %799
        %s802 = scalar_lea.vmem [#allocation2], 16
        %803 = vst.msk [vmem:[%s802] sm:$0xff] %vm791, %v800
        %804 = vrot.lane.b32.xlu0 %v790, 104
        %v805 = vpop.permute.xlu0 %804
        %s807 = scalar_lea.vmem [#allocation2], 24
        %808 = vst.msk [vmem:[%s807] sm:$0xff] %vm791, %v805
        %v809 = vld [vmem:[#allocation2] sm:$0xff]
        %v810 = vld [vmem:[#allocation2 + $0x8] sm:$0xff]
        %v811 = vld [vmem:[#allocation2 + $0x10] sm:$0xff]
        %v812 = vld [vmem:[#allocation2 + $0x18] sm:$0xff]
        %v813 = vld [vmem:[#allocation3] sm:$0xff]
        %v814 = vld [vmem:[#allocation3 + $0x8] sm:$0xff]
        %v815 = vld [vmem:[#allocation3 + $0x10] sm:$0xff]
        %v816 = vld [vmem:[#allocation3 + $0x18] sm:$0xff]
        %v817 = vld [vmem:[#allocation4] sm:$0xff]
        %v818 = vld [vmem:[#allocation4 + $0x8] sm:$0xff]
        %v819 = vld [vmem:[#allocation4 + $0x10] sm:$0xff]
        %v820 = vld [vmem:[#allocation4 + $0x18] sm:$0xff]
        %v822 = vsel %vm791, %v809, 0
        %v825 = vsel %vm791, %v813, 0
        %827 = vmatprep.subr.mxu0 0.0
        %828 = vmatpush1.xpose.msra.mxu0 %v825
        %829 = vmatprep.subr.mxu0 0.0
        %830 = vmatpush1.xpose.msra.mxu0 0.0
        %831 = vmatprep.subr.mxu0 0.0
        %832 = vmatpush1.xpose.msra.mxu0 0.0
        %833 = vmatprep.subr.mxu0 0.0
        %834 = vmatpush1.xpose.msra.mxu0 0.0
        %835 = vmatprep.subr.mxu0 0.0
        %836 = vmatpush1.xpose.msra.mxu0 0.0
        %837 = vmatprep.subr.mxu0 0.0
        %838 = vmatpush1.xpose.msra.mxu0 0.0
        %839 = vmatprep.subr.mxu0 0.0
        %840 = vmatpush1.xpose.msra.mxu0 0.0
        %841 = vmatprep.subr.mxu0 0.0
        %842 = vmatpush1.xpose.msra.mxu0 0.0
        %843 = vmatprep.subr.mxu0 0.0
        %844 = vmatpush1.xpose.msra.mxu0 0.0
        %845 = vmatprep.subr.mxu0 0.0
        %846 = vmatpush1.xpose.msra.mxu0 0.0
        %847 = vmatprep.subr.mxu0 0.0
        %848 = vmatpush1.xpose.msra.mxu0 0.0
        %849 = vmatprep.subr.mxu0 0.0
        %850 = vmatpush1.xpose.msra.mxu0 0.0
        %851 = vmatprep.subr.mxu0 0.0
        %852 = vmatpush1.xpose.msra.mxu0 0.0
        %853 = vmatprep.subr.mxu0 0.0
        %854 = vmatpush1.xpose.msra.mxu0 0.0
        %855 = vmatprep.subr.mxu0 0.0
        %856 = vmatpush1.xpose.msra.mxu0 0.0
        %857 = vmatprep.subr.mxu0 0.0
        %858 = vmatpush1.xpose.msra.mxu0 0.0
        %859 = vmatprep.subr.mxu0 0.0
        %860 = vmatpush1.xpose.msra.mxu0 0.0
        %861 = vmatprep.subr.mxu0 0.0
        %862 = vmatpush1.xpose.msra.mxu0 0.0
        %863 = vmatprep.subr.mxu0 0.0
        %864 = vmatpush1.xpose.msra.mxu0 0.0
        %865 = vmatprep.subr.mxu0 0.0
        %866 = vmatpush1.xpose.msra.mxu0 0.0
        %867 = vmatprep.subr.mxu0 0.0
        %868 = vmatpush1.xpose.msra.mxu0 0.0
        %869 = vmatprep.subr.mxu0 0.0
        %870 = vmatpush1.xpose.msra.mxu0 0.0
        %871 = vmatprep.subr.mxu0 0.0
        %872 = vmatpush1.xpose.msra.mxu0 0.0
        %873 = vmatprep.subr.mxu0 0.0
        %874 = vmatpush1.xpose.msra.mxu0 0.0
        %875 = vmatprep.subr.mxu0 0.0
        %876 = vmatpush1.xpose.msra.mxu0 0.0
        %877 = vmatprep.subr.mxu0 0.0
        %878 = vmatpush1.xpose.msra.mxu0 0.0
        %879 = vmatprep.subr.mxu0 0.0
        %880 = vmatpush1.xpose.msra.mxu0 0.0
        %881 = vmatprep.subr.mxu0 0.0
        %882 = vmatpush1.xpose.msra.mxu0 0.0
        %883 = vmatprep.subr.mxu0 0.0
        %884 = vmatpush1.xpose.msra.mxu0 0.0
        %885 = vmatprep.subr.mxu0 0.0
        %886 = vmatpush1.xpose.msra.mxu0 0.0
        %887 = vmatprep.subr.mxu0 0.0
        %888 = vmatpush1.xpose.msra.mxu0 0.0
        %889 = vmatprep.subr.mxu0 0.0
        %890 = vmatpush1.xpose.msra.mxu0 0.0
        %891 = vmatprep.mubr.f32.mxu0 0.0
        %892 = vmatmul.mubr.f32.gmra.mrb[0].mxu0 %v822
        %v893 = vpop.f32.mrb[0].mxu0
        %v894 = vadd.f32 0.0, %v893
        %v895 = vpop.f32.mrb[0].mxu0
        %896 = vdwg.mxu0
        %v898 = vsel %vm791, %v810, 0
        %v901 = vsel %vm791, %v814, 0
        %903 = vmatprep.subr.mxu0 0.0
        %904 = vmatpush1.xpose.msra.mxu0 %v901
        %905 = vmatprep.subr.mxu0 0.0
        %906 = vmatpush1.xpose.msra.mxu0 0.0
        %907 = vmatprep.subr.mxu0 0.0
        %908 = vmatpush1.xpose.msra.mxu0 0.0
        %909 = vmatprep.subr.mxu0 0.0
        %910 = vmatpush1.xpose.msra.mxu0 0.0
        %911 = vmatprep.subr.mxu0 0.0
        %912 = vmatpush1.xpose.msra.mxu0 0.0
        %913 = vmatprep.subr.mxu0 0.0
        %914 = vmatpush1.xpose.msra.mxu0 0.0
        %915 = vmatprep.subr.mxu0 0.0
        %916 = vmatpush1.xpose.msra.mxu0 0.0
        %917 = vmatprep.subr.mxu0 0.0
        %918 = vmatpush1.xpose.msra.mxu0 0.0
        %919 = vmatprep.subr.mxu0 0.0
        %920 = vmatpush1.xpose.msra.mxu0 0.0
        %921 = vmatprep.subr.mxu0 0.0
        %922 = vmatpush1.xpose.msra.mxu0 0.0
        %923 = vmatprep.subr.mxu0 0.0
        %924 = vmatpush1.xpose.msra.mxu0 0.0
        %925 = vmatprep.subr.mxu0 0.0
        %926 = vmatpush1.xpose.msra.mxu0 0.0
        %927 = vmatprep.subr.mxu0 0.0
        %928 = vmatpush1.xpose.msra.mxu0 0.0
        %929 = vmatprep.subr.mxu0 0.0
        %930 = vmatpush1.xpose.msra.mxu0 0.0
        %931 = vmatprep.subr.mxu0 0.0
        %932 = vmatpush1.xpose.msra.mxu0 0.0
        %933 = vmatprep.subr.mxu0 0.0
        %934 = vmatpush1.xpose.msra.mxu0 0.0
        %935 = vmatprep.subr.mxu0 0.0
        %936 = vmatpush1.xpose.msra.mxu0 0.0
        %937 = vmatprep.subr.mxu0 0.0
        %938 = vmatpush1.xpose.msra.mxu0 0.0
        %939 = vmatprep.subr.mxu0 0.0
        %940 = vmatpush1.xpose.msra.mxu0 0.0
        %941 = vmatprep.subr.mxu0 0.0
        %942 = vmatpush1.xpose.msra.mxu0 0.0
        %943 = vmatprep.subr.mxu0 0.0
        %944 = vmatpush1.xpose.msra.mxu0 0.0
        %945 = vmatprep.subr.mxu0 0.0
        %946 = vmatpush1.xpose.msra.mxu0 0.0
        %947 = vmatprep.subr.mxu0 0.0
        %948 = vmatpush1.xpose.msra.mxu0 0.0
        %949 = vmatprep.subr.mxu0 0.0
        %950 = vmatpush1.xpose.msra.mxu0 0.0
        %951 = vmatprep.subr.mxu0 0.0
        %952 = vmatpush1.xpose.msra.mxu0 0.0
        %953 = vmatprep.subr.mxu0 0.0
        %954 = vmatpush1.xpose.msra.mxu0 0.0
        %955 = vmatprep.subr.mxu0 0.0
        %956 = vmatpush1.xpose.msra.mxu0 0.0
        %957 = vmatprep.subr.mxu0 0.0
        %958 = vmatpush1.xpose.msra.mxu0 0.0
        %959 = vmatprep.subr.mxu0 0.0
        %960 = vmatpush1.xpose.msra.mxu0 0.0
        %961 = vmatprep.subr.mxu0 0.0
        %962 = vmatpush1.xpose.msra.mxu0 0.0
        %963 = vmatprep.subr.mxu0 0.0
        %964 = vmatpush1.xpose.msra.mxu0 0.0
        %965 = vmatprep.subr.mxu0 0.0
        %966 = vmatpush1.xpose.msra.mxu0 0.0
        %967 = vmatprep.mubr.f32.mxu0 0.0
        %968 = vmatmul.mubr.f32.gmra.mrb[0].mxu0 %v898
        %v969 = vpop.f32.mrb[0].mxu0
        %v970 = vadd.f32 0.0, %v969
        %v971 = vpop.f32.mrb[0].mxu0
        %972 = vdwg.mxu0
        %v974 = vsel %vm791, %v811, 0
        %v977 = vsel %vm791, %v815, 0
        %979 = vmatprep.subr.mxu0 0.0
        %980 = vmatpush1.xpose.msra.mxu0 %v977
        %981 = vmatprep.subr.mxu0 0.0
        %982 = vmatpush1.xpose.msra.mxu0 0.0
        %983 = vmatprep.subr.mxu0 0.0
        %984 = vmatpush1.xpose.msra.mxu0 0.0
        %985 = vmatprep.subr.mxu0 0.0
        %986 = vmatpush1.xpose.msra.mxu0 0.0
        %987 = vmatprep.subr.mxu0 0.0
        %988 = vmatpush1.xpose.msra.mxu0 0.0
        %989 = vmatprep.subr.mxu0 0.0
        %990 = vmatpush1.xpose.msra.mxu0 0.0
        %991 = vmatprep.subr.mxu0 0.0
        %992 = vmatpush1.xpose.msra.mxu0 0.0
        %993 = vmatprep.subr.mxu0 0.0
        %994 = vmatpush1.xpose.msra.mxu0 0.0
        %995 = vmatprep.subr.mxu0 0.0
        %996 = vmatpush1.xpose.msra.mxu0 0.0
        %997 = vmatprep.subr.mxu0 0.0
        %998 = vmatpush1.xpose.msra.mxu0 0.0
        %999 = vmatprep.subr.mxu0 0.0
        %1000 = vmatpush1.xpose.msra.mxu0 0.0
        %1001 = vmatprep.subr.mxu0 0.0
        %1002 = vmatpush1.xpose.msra.mxu0 0.0
        %1003 = vmatprep.subr.mxu0 0.0
        %1004 = vmatpush1.xpose.msra.mxu0 0.0
        %1005 = vmatprep.subr.mxu0 0.0
        %1006 = vmatpush1.xpose.msra.mxu0 0.0
        %1007 = vmatprep.subr.mxu0 0.0
        %1008 = vmatpush1.xpose.msra.mxu0 0.0
        %1009 = vmatprep.subr.mxu0 0.0
        %1010 = vmatpush1.xpose.msra.mxu0 0.0
        %1011 = vmatprep.subr.mxu0 0.0
        %1012 = vmatpush1.xpose.msra.mxu0 0.0
        %1013 = vmatprep.subr.mxu0 0.0
        %1014 = vmatpush1.xpose.msra.mxu0 0.0
        %1015 = vmatprep.subr.mxu0 0.0
        %1016 = vmatpush1.xpose.msra.mxu0 0.0
        %1017 = vmatprep.subr.mxu0 0.0
        %1018 = vmatpush1.xpose.msra.mxu0 0.0
        %1019 = vmatprep.subr.mxu0 0.0
        %1020 = vmatpush1.xpose.msra.mxu0 0.0
        %1021 = vmatprep.subr.mxu0 0.0
        %1022 = vmatpush1.xpose.msra.mxu0 0.0
        %1023 = vmatprep.subr.mxu0 0.0
        %1024 = vmatpush1.xpose.msra.mxu0 0.0
        %1025 = vmatprep.subr.mxu0 0.0
        %1026 = vmatpush1.xpose.msra.mxu0 0.0
        %1027 = vmatprep.subr.mxu0 0.0
        %1028 = vmatpush1.xpose.msra.mxu0 0.0
        %1029 = vmatprep.subr.mxu0 0.0
        %1030 = vmatpush1.xpose.msra.mxu0 0.0
        %1031 = vmatprep.subr.mxu0 0.0
        %1032 = vmatpush1.xpose.msra.mxu0 0.0
        %1033 = vmatprep.subr.mxu0 0.0
        %1034 = vmatpush1.xpose.msra.mxu0 0.0
        %1035 = vmatprep.subr.mxu0 0.0
        %1036 = vmatpush1.xpose.msra.mxu0 0.0
        %1037 = vmatprep.subr.mxu0 0.0
        %1038 = vmatpush1.xpose.msra.mxu0 0.0
        %1039 = vmatprep.subr.mxu0 0.0
        %1040 = vmatpush1.xpose.msra.mxu0 0.0
        %1041 = vmatprep.subr.mxu0 0.0
        %1042 = vmatpush1.xpose.msra.mxu0 0.0
        %1043 = vmatprep.mubr.f32.mxu0 0.0
        %1044 = vmatmul.mubr.f32.gmra.mrb[0].mxu0 %v974
        %v1045 = vpop.f32.mrb[0].mxu0
        %v1046 = vadd.f32 0.0, %v1045
        %v1047 = vpop.f32.mrb[0].mxu0
        %1048 = vdwg.mxu0
        %v1050 = vsel %vm791, %v812, 0
        %v1053 = vsel %vm791, %v816, 0
        %1055 = vmatprep.subr.mxu0 0.0
        %1056 = vmatpush1.xpose.msra.mxu0 %v1053
        %1057 = vmatprep.subr.mxu0 0.0
        %1058 = vmatpush1.xpose.msra.mxu0 0.0
        %1059 = vmatprep.subr.mxu0 0.0
        %1060 = vmatpush1.xpose.msra.mxu0 0.0
        %1061 = vmatprep.subr.mxu0 0.0
        %1062 = vmatpush1.xpose.msra.mxu0 0.0
        %1063 = vmatprep.subr.mxu0 0.0
        %1064 = vmatpush1.xpose.msra.mxu0 0.0
        %1065 = vmatprep.subr.mxu0 0.0
        %1066 = vmatpush1.xpose.msra.mxu0 0.0
        %1067 = vmatprep.subr.mxu0 0.0
        %1068 = vmatpush1.xpose.msra.mxu0 0.0
        %1069 = vmatprep.subr.mxu0 0.0
        %1070 = vmatpush1.xpose.msra.mxu0 0.0
        %1071 = vmatprep.subr.mxu0 0.0
        %1072 = vmatpush1.xpose.msra.mxu0 0.0
        %1073 = vmatprep.subr.mxu0 0.0
        %1074 = vmatpush1.xpose.msra.mxu0 0.0
        %1075 = vmatprep.subr.mxu0 0.0
        %1076 = vmatpush1.xpose.msra.mxu0 0.0
        %1077 = vmatprep.subr.mxu0 0.0
        %1078 = vmatpush1.xpose.msra.mxu0 0.0
        %1079 = vmatprep.subr.mxu0 0.0
        %1080 = vmatpush1.xpose.msra.mxu0 0.0
        %1081 = vmatprep.subr.mxu0 0.0
        %1082 = vmatpush1.xpose.msra.mxu0 0.0
        %1083 = vmatprep.subr.mxu0 0.0
        %1084 = vmatpush1.xpose.msra.mxu0 0.0
        %1085 = vmatprep.subr.mxu0 0.0
        %1086 = vmatpush1.xpose.msra.mxu0 0.0
        %1087 = vmatprep.subr.mxu0 0.0
        %1088 = vmatpush1.xpose.msra.mxu0 0.0
        %1089 = vmatprep.subr.mxu0 0.0
        %1090 = vmatpush1.xpose.msra.mxu0 0.0
        %1091 = vmatprep.subr.mxu0 0.0
        %1092 = vmatpush1.xpose.msra.mxu0 0.0
        %1093 = vmatprep.subr.mxu0 0.0
        %1094 = vmatpush1.xpose.msra.mxu0 0.0
        %1095 = vmatprep.subr.mxu0 0.0
        %1096 = vmatpush1.xpose.msra.mxu0 0.0
        %1097 = vmatprep.subr.mxu0 0.0
        %1098 = vmatpush1.xpose.msra.mxu0 0.0
        %1099 = vmatprep.subr.mxu0 0.0
        %1100 = vmatpush1.xpose.msra.mxu0 0.0
        %1101 = vmatprep.subr.mxu0 0.0
        %1102 = vmatpush1.xpose.msra.mxu0 0.0
        %1103 = vmatprep.subr.mxu0 0.0
        %1104 = vmatpush1.xpose.msra.mxu0 0.0
        %1105 = vmatprep.subr.mxu0 0.0
        %1106 = vmatpush1.xpose.msra.mxu0 0.0
        %1107 = vmatprep.subr.mxu0 0.0
        %1108 = vmatpush1.xpose.msra.mxu0 0.0
        %1109 = vmatprep.subr.mxu0 0.0
        %1110 = vmatpush1.xpose.msra.mxu0 0.0
        %1111 = vmatprep.subr.mxu0 0.0
        %1112 = vmatpush1.xpose.msra.mxu0 0.0
        %1113 = vmatprep.subr.mxu0 0.0
        %1114 = vmatpush1.xpose.msra.mxu0 0.0
        %1115 = vmatprep.subr.mxu0 0.0
        %1116 = vmatpush1.xpose.msra.mxu0 0.0
        %1117 = vmatprep.subr.mxu0 0.0
        %1118 = vmatpush1.xpose.msra.mxu0 0.0
        %1119 = vmatprep.mubr.f32.mxu0 0.0
        %1120 = vmatmul.mubr.f32.gmra.mrb[0].mxu0 %v1050
        %v1121 = vpop.f32.mrb[0].mxu0
        %v1122 = vadd.f32 0.0, %v1121
        %v1123 = vpop.f32.mrb[0].mxu0
        %1124 = vdwg.mxu0
        %v1125 = vld [vmem:[%s509] sm:$0xff]
        %vm1126 = vcmp.eq.f32.partialorder %v1125, 0.0
        %v1127 = vsel %vm1126, 1, 0
        %vm1128 = vcmp.eq.s32.totalorder %v1127, 1
        %v1129 = vsel %vm1128, -1e+09, %v894
        %v1130 = vsel %vm1128, -1e+09, %v970
        %v1131 = vsel %vm1128, -1e+09, %v1046
        %v1132 = vsel %vm1128, -1e+09, %v1122
        %v1133 = vsel %vm791, %v1129, -inf
        %1134 = vmax.xlane.f32.xlu0 %v1133
        %v1135 = vpop.xlane.xlu0 %1134
        %v1136 = vsel %vm791, %v1130, -inf
        %1137 = vmax.xlane.f32.xlu0 %v1136
        %v1138 = vpop.xlane.xlu0 %1137
        %v1139 = vsel %vm791, %v1131, -inf
        %1140 = vmax.xlane.f32.xlu0 %v1139
        %v1141 = vpop.xlane.xlu0 %1140
        %v1142 = vsel %vm791, %v1132, -inf
        %1143 = vmax.xlane.f32.xlu0 %v1142
        %v1144 = vpop.xlane.xlu0 %1143
        %v1145 = vsub.f32 %v1129, %v1135
        %v1146 = vsub.f32 %v1130, %v1138
        %v1147 = vsub.f32 %v1131, %v1141
        %v1148 = vsub.f32 %v1132, %v1144
        %v1149 = vmul.f32 %v1145, 1.442695
        %v1150 = vpow.pop %v1149
        %v1151 = vmul.f32 %v1146, 1.442695
        %v1152 = vpow.pop %v1151
        %v1153 = vmul.f32 %v1147, 1.442695
        %v1154 = vpow.pop %v1153
        %v1155 = vmul.f32 %v1148, 1.442695
        %v1156 = vpow.pop %v1155
        %v1157 = vsel %vm791, %v1150, 0.0
        %1158 = vadd.xlane.f32.xlu0 %v1157
        %v1159 = vpop.xlane.xlu0 %1158
        %v1160 = vsel %vm791, %v1152, 0.0
        %1161 = vadd.xlane.f32.xlu0 %v1160
        %v1162 = vpop.xlane.xlu0 %1161
        %v1163 = vsel %vm791, %v1154, 0.0
        %1164 = vadd.xlane.f32.xlu0 %v1163
        %v1165 = vpop.xlane.xlu0 %1164
        %v1166 = vsel %vm791, %v1156, 0.0
        %1167 = vadd.xlane.f32.xlu0 %v1166
        %v1168 = vpop.xlane.xlu0 %1167
        %v1169 = vrcp.pop %v1159
        %v1170 = vrcp.pop %v1162
        %v1171 = vrcp.pop %v1165
        %v1172 = vrcp.pop %v1168
        %v1173 = vmul.f32 %v1150, %v1169
        %v1174 = vmul.f32 %v1152, %v1170
        %v1175 = vmul.f32 %v1154, %v1171
        %v1176 = vmul.f32 %v1156, %v1172
        %1177 = vst.msk [vmem:[%s576] sm:$0xff] %vm791, %v1173
        %1178 = vst.msk [vmem:[%s576 + $0x8] sm:$0xff] %vm791, %v1174
        %1179 = vst.msk [vmem:[%s576 + $0x10] sm:$0xff] %vm791, %v1175
        %1180 = vst.msk [vmem:[%s576 + $0x18] sm:$0xff] %vm791, %v1176
        %v1182 = vsel %vm791, %v1173, 0
        %1184 = vmatprep.subr.mxu0 0.0
        %1185 = vmatpush1.msra.mxu0 %v817
        %1186 = vmatprep.subr.mxu0 0.0
        %1187 = vmatpush1.msra.mxu0 0.0
        %1188 = vmatprep.subr.mxu0 0.0
        %1189 = vmatpush1.msra.mxu0 0.0
        %1190 = vmatprep.subr.mxu0 0.0
        %1191 = vmatpush1.msra.mxu0 0.0
        %1192 = vmatprep.subr.mxu0 0.0
        %1193 = vmatpush1.msra.mxu0 0.0
        %1194 = vmatprep.subr.mxu0 0.0
        %1195 = vmatpush1.msra.mxu0 0.0
        %1196 = vmatprep.subr.mxu0 0.0
        %1197 = vmatpush1.msra.mxu0 0.0
        %1198 = vmatprep.subr.mxu0 0.0
        %1199 = vmatpush1.msra.mxu0 0.0
        %1200 = vmatprep.subr.mxu0 0.0
        %1201 = vmatpush1.msra.mxu0 0.0
        %1202 = vmatprep.subr.mxu0 0.0
        %1203 = vmatpush1.msra.mxu0 0.0
        %1204 = vmatprep.subr.mxu0 0.0
        %1205 = vmatpush1.msra.mxu0 0.0
        %1206 = vmatprep.subr.mxu0 0.0
        %1207 = vmatpush1.msra.mxu0 0.0
        %1208 = vmatprep.subr.mxu0 0.0
        %1209 = vmatpush1.msra.mxu0 0.0
        %1210 = vmatprep.subr.mxu0 0.0
        %1211 = vmatpush1.msra.mxu0 0.0
        %1212 = vmatprep.subr.mxu0 0.0
        %1213 = vmatpush1.msra.mxu0 0.0
        %1214 = vmatprep.subr.mxu0 0.0
        %1215 = vmatpush1.msra.mxu0 0.0
        %1216 = vmatprep.subr.mxu0 0.0
        %1217 = vmatpush1.msra.mxu0 0.0
        %1218 = vmatprep.subr.mxu0 0.0
        %1219 = vmatpush1.msra.mxu0 0.0
        %1220 = vmatprep.subr.mxu0 0.0
        %1221 = vmatpush1.msra.mxu0 0.0
        %1222 = vmatprep.subr.mxu0 0.0
        %1223 = vmatpush1.msra.mxu0 0.0
        %1224 = vmatprep.subr.mxu0 0.0
        %1225 = vmatpush1.msra.mxu0 0.0
        %1226 = vmatprep.subr.mxu0 0.0
        %1227 = vmatpush1.msra.mxu0 0.0
        %1228 = vmatprep.subr.mxu0 0.0
        %1229 = vmatpush1.msra.mxu0 0.0
        %1230 = vmatprep.subr.mxu0 0.0
        %1231 = vmatpush1.msra.mxu0 0.0
        %1232 = vmatprep.subr.mxu0 0.0
        %1233 = vmatpush1.msra.mxu0 0.0
        %1234 = vmatprep.subr.mxu0 0.0
        %1235 = vmatpush1.msra.mxu0 0.0
        %1236 = vmatprep.subr.mxu0 0.0
        %1237 = vmatpush1.msra.mxu0 0.0
        %1238 = vmatprep.subr.mxu0 0.0
        %1239 = vmatpush1.msra.mxu0 0.0
        %1240 = vmatprep.subr.mxu0 0.0
        %1241 = vmatpush1.msra.mxu0 0.0
        %1242 = vmatprep.subr.mxu0 0.0
        %1243 = vmatpush1.msra.mxu0 0.0
        %1244 = vmatprep.subr.mxu0 0.0
        %1245 = vmatpush1.msra.mxu0 0.0
        %1246 = vmatprep.subr.mxu0 0.0
        %1247 = vmatpush1.msra.mxu0 0.0
        %1248 = vmatprep.mubr.f32.mxu0 0.0
        %1249 = vmatmul.mubr.f32.gmra.mrb[0].mxu0 %v1182
        %v1250 = vpop.f32.mrb[0].mxu0
        %v1251 = vadd.f32 0.0, %v1250
        %v1252 = vpop.f32.mrb[0].mxu0
        %1253 = vdwg.mxu0
        %v1255 = vsel %vm791, %v1174, 0
        %1257 = vmatprep.subr.mxu0 0.0
        %1258 = vmatpush1.msra.mxu0 %v818
        %1259 = vmatprep.subr.mxu0 0.0
        %1260 = vmatpush1.msra.mxu0 0.0
        %1261 = vmatprep.subr.mxu0 0.0
        %1262 = vmatpush1.msra.mxu0 0.0
        %1263 = vmatprep.subr.mxu0 0.0
        %1264 = vmatpush1.msra.mxu0 0.0
        %1265 = vmatprep.subr.mxu0 0.0
        %1266 = vmatpush1.msra.mxu0 0.0
        %1267 = vmatprep.subr.mxu0 0.0
        %1268 = vmatpush1.msra.mxu0 0.0
        %1269 = vmatprep.subr.mxu0 0.0
        %1270 = vmatpush1.msra.mxu0 0.0
        %1271 = vmatprep.subr.mxu0 0.0
        %1272 = vmatpush1.msra.mxu0 0.0
        %1273 = vmatprep.subr.mxu0 0.0
        %1274 = vmatpush1.msra.mxu0 0.0
        %1275 = vmatprep.subr.mxu0 0.0
        %1276 = vmatpush1.msra.mxu0 0.0
        %1277 = vmatprep.subr.mxu0 0.0
        %1278 = vmatpush1.msra.mxu0 0.0
        %1279 = vmatprep.subr.mxu0 0.0
        %1280 = vmatpush1.msra.mxu0 0.0
        %1281 = vmatprep.subr.mxu0 0.0
        %1282 = vmatpush1.msra.mxu0 0.0
        %1283 = vmatprep.subr.mxu0 0.0
        %1284 = vmatpush1.msra.mxu0 0.0
        %1285 = vmatprep.subr.mxu0 0.0
        %1286 = vmatpush1.msra.mxu0 0.0
        %1287 = vmatprep.subr.mxu0 0.0
        %1288 = vmatpush1.msra.mxu0 0.0
        %1289 = vmatprep.subr.mxu0 0.0
        %1290 = vmatpush1.msra.mxu0 0.0
        %1291 = vmatprep.subr.mxu0 0.0
        %1292 = vmatpush1.msra.mxu0 0.0
        %1293 = vmatprep.subr.mxu0 0.0
        %1294 = vmatpush1.msra.mxu0 0.0
        %1295 = vmatprep.subr.mxu0 0.0
        %1296 = vmatpush1.msra.mxu0 0.0
        %1297 = vmatprep.subr.mxu0 0.0
        %1298 = vmatpush1.msra.mxu0 0.0
        %1299 = vmatprep.subr.mxu0 0.0
        %1300 = vmatpush1.msra.mxu0 0.0
        %1301 = vmatprep.subr.mxu0 0.0
        %1302 = vmatpush1.msra.mxu0 0.0
        %1303 = vmatprep.subr.mxu0 0.0
        %1304 = vmatpush1.msra.mxu0 0.0
        %1305 = vmatprep.subr.mxu0 0.0
        %1306 = vmatpush1.msra.mxu0 0.0
        %1307 = vmatprep.subr.mxu0 0.0
        %1308 = vmatpush1.msra.mxu0 0.0
        %1309 = vmatprep.subr.mxu0 0.0
        %1310 = vmatpush1.msra.mxu0 0.0
        %1311 = vmatprep.subr.mxu0 0.0
        %1312 = vmatpush1.msra.mxu0 0.0
        %1313 = vmatprep.subr.mxu0 0.0
        %1314 = vmatpush1.msra.mxu0 0.0
        %1315 = vmatprep.subr.mxu0 0.0
        %1316 = vmatpush1.msra.mxu0 0.0
        %1317 = vmatprep.subr.mxu0 0.0
        %1318 = vmatpush1.msra.mxu0 0.0
        %1319 = vmatprep.subr.mxu0 0.0
        %1320 = vmatpush1.msra.mxu0 0.0
        %1321 = vmatprep.mubr.f32.mxu0 0.0
        %1322 = vmatmul.mubr.f32.gmra.mrb[0].mxu0 %v1255
        %v1323 = vpop.f32.mrb[0].mxu0
        %v1324 = vadd.f32 0.0, %v1323
        %v1325 = vpop.f32.mrb[0].mxu0
        %1326 = vdwg.mxu0
        %v1328 = vsel %vm791, %v1175, 0
        %1330 = vmatprep.subr.mxu0 0.0
        %1331 = vmatpush1.msra.mxu0 %v819
        %1332 = vmatprep.subr.mxu0 0.0
        %1333 = vmatpush1.msra.mxu0 0.0
        %1334 = vmatprep.subr.mxu0 0.0
        %1335 = vmatpush1.msra.mxu0 0.0
        %1336 = vmatprep.subr.mxu0 0.0
        %1337 = vmatpush1.msra.mxu0 0.0
        %1338 = vmatprep.subr.mxu0 0.0
        %1339 = vmatpush1.msra.mxu0 0.0
        %1340 = vmatprep.subr.mxu0 0.0
        %1341 = vmatpush1.msra.mxu0 0.0
        %1342 = vmatprep.subr.mxu0 0.0
        %1343 = vmatpush1.msra.mxu0 0.0
        %1344 = vmatprep.subr.mxu0 0.0
        %1345 = vmatpush1.msra.mxu0 0.0
        %1346 = vmatprep.subr.mxu0 0.0
        %1347 = vmatpush1.msra.mxu0 0.0
        %1348 = vmatprep.subr.mxu0 0.0
        %1349 = vmatpush1.msra.mxu0 0.0
        %1350 = vmatprep.subr.mxu0 0.0
        %1351 = vmatpush1.msra.mxu0 0.0
        %1352 = vmatprep.subr.mxu0 0.0
        %1353 = vmatpush1.msra.mxu0 0.0
        %1354 = vmatprep.subr.mxu0 0.0
        %1355 = vmatpush1.msra.mxu0 0.0
        %1356 = vmatprep.subr.mxu0 0.0
        %1357 = vmatpush1.msra.mxu0 0.0
        %1358 = vmatprep.subr.mxu0 0.0
        %1359 = vmatpush1.msra.mxu0 0.0
        %1360 = vmatprep.subr.mxu0 0.0
        %1361 = vmatpush1.msra.mxu0 0.0
        %1362 = vmatprep.subr.mxu0 0.0
        %1363 = vmatpush1.msra.mxu0 0.0
        %1364 = vmatprep.subr.mxu0 0.0
        %1365 = vmatpush1.msra.mxu0 0.0
        %1366 = vmatprep.subr.mxu0 0.0
        %1367 = vmatpush1.msra.mxu0 0.0
        %1368 = vmatprep.subr.mxu0 0.0
        %1369 = vmatpush1.msra.mxu0 0.0
        %1370 = vmatprep.subr.mxu0 0.0
        %1371 = vmatpush1.msra.mxu0 0.0
        %1372 = vmatprep.subr.mxu0 0.0
        %1373 = vmatpush1.msra.mxu0 0.0
        %1374 = vmatprep.subr.mxu0 0.0
        %1375 = vmatpush1.msra.mxu0 0.0
        %1376 = vmatprep.subr.mxu0 0.0
        %1377 = vmatpush1.msra.mxu0 0.0
        %1378 = vmatprep.subr.mxu0 0.0
        %1379 = vmatpush1.msra.mxu0 0.0
        %1380 = vmatprep.subr.mxu0 0.0
        %1381 = vmatpush1.msra.mxu0 0.0
        %1382 = vmatprep.subr.mxu0 0.0
        %1383 = vmatpush1.msra.mxu0 0.0
        %1384 = vmatprep.subr.mxu0 0.0
        %1385 = vmatpush1.msra.mxu0 0.0
        %1386 = vmatprep.subr.mxu0 0.0
        %1387 = vmatpush1.msra.mxu0 0.0
        %1388 = vmatprep.subr.mxu0 0.0
        %1389 = vmatpush1.msra.mxu0 0.0
        %1390 = vmatprep.subr.mxu0 0.0
        %1391 = vmatpush1.msra.mxu0 0.0
        %1392 = vmatprep.subr.mxu0 0.0
        %1393 = vmatpush1.msra.mxu0 0.0
        %1394 = vmatprep.mubr.f32.mxu0 0.0
        %1395 = vmatmul.mubr.f32.gmra.mrb[0].mxu0 %v1328
        %v1396 = vpop.f32.mrb[0].mxu0
        %v1397 = vadd.f32 0.0, %v1396
        %v1398 = vpop.f32.mrb[0].mxu0
        %1399 = vdwg.mxu0
        %v1401 = vsel %vm791, %v1176, 0
        %1403 = vmatprep.subr.mxu0 0.0
        %1404 = vmatpush1.msra.mxu0 %v820
        %1405 = vmatprep.subr.mxu0 0.0
        %1406 = vmatpush1.msra.mxu0 0.0
        %1407 = vmatprep.subr.mxu0 0.0
        %1408 = vmatpush1.msra.mxu0 0.0
        %1409 = vmatprep.subr.mxu0 0.0
        %1410 = vmatpush1.msra.mxu0 0.0
        %1411 = vmatprep.subr.mxu0 0.0
        %1412 = vmatpush1.msra.mxu0 0.0
        %1413 = vmatprep.subr.mxu0 0.0
        %1414 = vmatpush1.msra.mxu0 0.0
        %1415 = vmatprep.subr.mxu0 0.0
        %1416 = vmatpush1.msra.mxu0 0.0
        %1417 = vmatprep.subr.mxu0 0.0
        %1418 = vmatpush1.msra.mxu0 0.0
        %1419 = vmatprep.subr.mxu0 0.0
        %1420 = vmatpush1.msra.mxu0 0.0
        %1421 = vmatprep.subr.mxu0 0.0
        %1422 = vmatpush1.msra.mxu0 0.0
        %1423 = vmatprep.subr.mxu0 0.0
        %1424 = vmatpush1.msra.mxu0 0.0
        %1425 = vmatprep.subr.mxu0 0.0
        %1426 = vmatpush1.msra.mxu0 0.0
        %1427 = vmatprep.subr.mxu0 0.0
        %1428 = vmatpush1.msra.mxu0 0.0
        %1429 = vmatprep.subr.mxu0 0.0
        %1430 = vmatpush1.msra.mxu0 0.0
        %1431 = vmatprep.subr.mxu0 0.0
        %1432 = vmatpush1.msra.mxu0 0.0
        %1433 = vmatprep.subr.mxu0 0.0
        %1434 = vmatpush1.msra.mxu0 0.0
        %1435 = vmatprep.subr.mxu0 0.0
        %1436 = vmatpush1.msra.mxu0 0.0
        %1437 = vmatprep.subr.mxu0 0.0
        %1438 = vmatpush1.msra.mxu0 0.0
        %1439 = vmatprep.subr.mxu0 0.0
        %1440 = vmatpush1.msra.mxu0 0.0
        %1441 = vmatprep.subr.mxu0 0.0
        %1442 = vmatpush1.msra.mxu0 0.0
        %1443 = vmatprep.subr.mxu0 0.0
        %1444 = vmatpush1.msra.mxu0 0.0
        %1445 = vmatprep.subr.mxu0 0.0
        %1446 = vmatpush1.msra.mxu0 0.0
        %1447 = vmatprep.subr.mxu0 0.0
        %1448 = vmatpush1.msra.mxu0 0.0
        %1449 = vmatprep.subr.mxu0 0.0
        %1450 = vmatpush1.msra.mxu0 0.0
        %1451 = vmatprep.subr.mxu0 0.0
        %1452 = vmatpush1.msra.mxu0 0.0
        %1453 = vmatprep.subr.mxu0 0.0
        %1454 = vmatpush1.msra.mxu0 0.0
        %1455 = vmatprep.subr.mxu0 0.0
        %1456 = vmatpush1.msra.mxu0 0.0
        %1457 = vmatprep.subr.mxu0 0.0
        %1458 = vmatpush1.msra.mxu0 0.0
        %1459 = vmatprep.subr.mxu0 0.0
        %1460 = vmatpush1.msra.mxu0 0.0
        %1461 = vmatprep.subr.mxu0 0.0
        %1462 = vmatpush1.msra.mxu0 0.0
        %1463 = vmatprep.subr.mxu0 0.0
        %1464 = vmatpush1.msra.mxu0 0.0
        %1465 = vmatprep.subr.mxu0 0.0
        %1466 = vmatpush1.msra.mxu0 0.0
        %1467 = vmatprep.mubr.f32.mxu0 0.0
        %1468 = vmatmul.mubr.f32.gmra.mrb[0].mxu0 %v1401
        %v1469 = vpop.f32.mrb[0].mxu0
        %v1470 = vadd.f32 0.0, %v1469
        %v1471 = vpop.f32.mrb[0].mxu0
        %1472 = vdwg.mxu0
        %1473 = vst.msk [vmem:[#allocation5] sm:$0xff] %vm791, %v1251
        %1475 = vrot.lane.b32.xlu0 %v1324, 8
        %v1476 = vpop.permute.xlu0 %1475
        %vm1478 = vcmask 130112
        %1479 = vst.msk [vmem:[#allocation5] sm:$0xff] %vm1478, %v1476
        %1481 = vrot.lane.b32.xlu0 %v1397, 16
        %v1482 = vpop.permute.xlu0 %1481
        %vm1484 = vcmask 195712
        %1485 = vst.msk [vmem:[#allocation5] sm:$0xff] %vm1484, %v1482
        %1487 = vrot.lane.b32.xlu0 %v1470, 24
        %v1488 = vpop.permute.xlu0 %1487
        %vm1490 = vcmask 261312
        %1491 = vst.msk [vmem:[#allocation5] sm:$0xff] %vm1490, %v1488
        %v1492 = vld [vmem:[#allocation5] sm:$0xff]
        %v1493 = vld [vmem:[#allocation15] sm:$0xff]
        %v1494 = vld [vmem:[#allocation15 + $0x8] sm:$0xff]
        %v1495 = vld [vmem:[#allocation15 + $0x10] sm:$0xff]
        %v1496 = vld [vmem:[#allocation15 + $0x18] sm:$0xff]
        %v1497 = vld [vmem:[%s8] sm:$0x1]
        %v1499 = vlaneseq
        %v1500 = vshrl.u32 %v1499, 7
        %v1501 = vsub.s32 0, %v1500
        %v1502 = vrot.slane %v1497, %v1501
        %v1505 = vsel %vm716, %v1492, 0
        %1507 = vmatprep.subr.mxu0 0.0
        %1508 = vmatpush1.msra.mxu0 %v1493
        %1509 = vmatprep.subr.mxu0 0.0
        %1510 = vmatpush1.msra.mxu0 %v1494
        %1511 = vmatprep.subr.mxu0 0.0
        %1512 = vmatpush1.msra.mxu0 %v1495
        %1513 = vmatprep.subr.mxu0 0.0
        %1514 = vmatpush1.msra.mxu0 %v1496
        %1515 = vmatprep.subr.mxu0 0.0
        %1516 = vmatpush1.msra.mxu0 0.0
        %1517 = vmatprep.subr.mxu0 0.0
        %1518 = vmatpush1.msra.mxu0 0.0
        %1519 = vmatprep.subr.mxu0 0.0
        %1520 = vmatpush1.msra.mxu0 0.0
        %1521 = vmatprep.subr.mxu0 0.0
        %1522 = vmatpush1.msra.mxu0 0.0
        %1523 = vmatprep.subr.mxu0 0.0
        %1524 = vmatpush1.msra.mxu0 0.0
        %1525 = vmatprep.subr.mxu0 0.0
        %1526 = vmatpush1.msra.mxu0 0.0
        %1527 = vmatprep.subr.mxu0 0.0
        %1528 = vmatpush1.msra.mxu0 0.0
        %1529 = vmatprep.subr.mxu0 0.0
        %1530 = vmatpush1.msra.mxu0 0.0
        %1531 = vmatprep.subr.mxu0 0.0
        %1532 = vmatpush1.msra.mxu0 0.0
        %1533 = vmatprep.subr.mxu0 0.0
        %1534 = vmatpush1.msra.mxu0 0.0
        %1535 = vmatprep.subr.mxu0 0.0
        %1536 = vmatpush1.msra.mxu0 0.0
        %1537 = vmatprep.subr.mxu0 0.0
        %1538 = vmatpush1.msra.mxu0 0.0
        %1539 = vmatprep.subr.mxu0 0.0
        %1540 = vmatpush1.msra.mxu0 0.0
        %1541 = vmatprep.subr.mxu0 0.0
        %1542 = vmatpush1.msra.mxu0 0.0
        %1543 = vmatprep.subr.mxu0 0.0
        %1544 = vmatpush1.msra.mxu0 0.0
        %1545 = vmatprep.subr.mxu0 0.0
        %1546 = vmatpush1.msra.mxu0 0.0
        %1547 = vmatprep.subr.mxu0 0.0
        %1548 = vmatpush1.msra.mxu0 0.0
        %1549 = vmatprep.subr.mxu0 0.0
        %1550 = vmatpush1.msra.mxu0 0.0
        %1551 = vmatprep.subr.mxu0 0.0
        %1552 = vmatpush1.msra.mxu0 0.0
        %1553 = vmatprep.subr.mxu0 0.0
        %1554 = vmatpush1.msra.mxu0 0.0
        %1555 = vmatprep.subr.mxu0 0.0
        %1556 = vmatpush1.msra.mxu0 0.0
        %1557 = vmatprep.subr.mxu0 0.0
        %1558 = vmatpush1.msra.mxu0 0.0
        %1559 = vmatprep.subr.mxu0 0.0
        %1560 = vmatpush1.msra.mxu0 0.0
        %1561 = vmatprep.subr.mxu0 0.0
        %1562 = vmatpush1.msra.mxu0 0.0
        %1563 = vmatprep.subr.mxu0 0.0
        %1564 = vmatpush1.msra.mxu0 0.0
        %1565 = vmatprep.subr.mxu0 0.0
        %1566 = vmatpush1.msra.mxu0 0.0
        %1567 = vmatprep.subr.mxu0 0.0
        %1568 = vmatpush1.msra.mxu0 0.0
        %1569 = vmatprep.subr.mxu0 0.0
        %1570 = vmatpush1.msra.mxu0 0.0
        %1571 = vmatprep.mubr.f32.mxu0 0.0
        %1572 = vmatmul.mubr.f32.gmra.mrb[0].mxu0 %v1505
        %v1573 = vpop.f32.mrb[0].mxu0
        %v1574 = vadd.f32 %v1502, %v1573
        %v1575 = vpop.f32.mrb[0].mxu0
        %1576 = vdwg.mxu0
        %v1577 = vadd.f32 %v1574, %v704
        %v1578 = vld [vmem:[%s9] sm:$0x1]
        %v1579 = vld [vmem:[%s10] sm:$0x1]
        %v1580 = vsel %vm716, %v1577, 0.0
        %1581 = vadd.xlane.f32.xlu0 %v1580
        %v1582 = vpop.xlane.xlu0 %1581
        %v1583 = vrcp.pop 32.0
        %v1584 = vmul.f32 %v1582, %v1583
        %v1585 = vsub.f32 %v1577, %v1584
        %v1586 = vmul.f32 %v1585, %v1585
        %v1587 = vsel %vm716, %v1586, 0.0
        %1588 = vadd.xlane.f32.xlu0 %v1587
        %v1589 = vpop.xlane.xlu0 %1588
        %v1590 = vmul.f32 %v1589, %v1583
        %v1591 = vadd.f32 %v1590, 1e-05
        %v1592 = vrsqrt.pop %v1591
        %v1593 = vmul.f32 %v1585, %v1592
        %v1595 = vlaneseq
        %v1596 = vshrl.u32 %v1595, 7
        %v1597 = vsub.s32 0, %v1596
        %v1598 = vrot.slane %v1578, %v1597
        %v1600 = vmul.f32 %v1593, %v1598
        %v1602 = vlaneseq
        %v1603 = vshrl.u32 %v1602, 7
        %v1604 = vsub.s32 0, %v1603
        %v1605 = vrot.slane %v1579, %v1604
        %v1607 = vadd.f32 %v1600, %v1605
        %1608 = vst.msk [vmem:[%s569] sm:$0xff] %vm716, %v1607
        %s1609 = sand.u32 %s310, 1
        %s1610 = scalar_lea.sflag [#allocation8], %s1609
        %s1611 = sand.u32 %s310, 1
        %s1612 = smul.addr %s1611, 8
        %s1613 = scalar_lea.vmem [#allocation17], %s1612
        %s1614 = sand.u32 %s338, 1
        %s1615 = scalar_lea.sflag [#allocation19], %s1614
        %s1616 = sand.u32 %s338, 1
        %s1617 = smul.addr %s1616, 32
        %s1618 = scalar_lea.vmem [#allocation18], %s1617
        // Predicated region
        $region93: #{tpu_custom_call.1} parent=63 // pred_check
          %p1619 = pneg %p320
        $region94: #{tpu_custom_call.1} parent=63 // pred_check_branch
          %1621 = sbr.rel (%p1619) target = $region96
        $region95: #{tpu_custom_call.1} parent=63 // pred_region
          %s1623 = ssub.s32 128, 128
          %1624 = vsyncadd %s1610, %s1623
          %s1625 = sadd.s32 %s43, %s42
          %s1626 = smul.addr %s1625, 128
          %s1627 = scalar_lea.hbm %s11, %s1626
          %s1629 = sshll.u32 %s1613, 4
          %s1630 = int_to_ptr.vmem [resolvable:$true] %s1629
          %1632 = dma.vmem_to_hbm [thread:$0]  %s1630, 128, %s1627, %s1610
        $region96: #{tpu_custom_call.1} parent=63 // pred_fallthru
          _
        // Predicated region
        $region97: #{tpu_custom_call.1} parent=63 // pred_check
          %p1633 = pneg %p348
        $region98: #{tpu_custom_call.1} parent=63 // pred_check_branch
          %1635 = sbr.rel (%p1633) target = $region100
        $region99: #{tpu_custom_call.1} parent=63 // pred_region
          %s1637 = ssub.s32 512, 512
          %1638 = vsyncadd %s1615, %s1637
          %s1639 = smul.addr %s42, 4
          %s1640 = sadd.s32 %s43, %s1639
          %s1641 = smul.addr %s1640, 128
          %s1642 = scalar_lea.hbm %s12, %s1641
          %s1643 = sshll.u32 %s1618, 4
          %s1644 = int_to_ptr.vmem [resolvable:$true] %s1643
          %1649 = dma.vmem_to_hbm [thread:$0]  %s1644, 512, %s1642, %s1615, 128, 128, 8
        $region100: #{tpu_custom_call.1} parent=63 // pred_fallthru
          _
      $region64: #{tpu_custom_call.1} parent=5 // pred_fallthru
        _
      %p1650 = scmp.le.s32.totalorder 2, %s33
      // Predicated region
      $region101: #{tpu_custom_call.1} parent=5 // pred_check
        %p1651 = pneg %p1650
      $region102: #{tpu_custom_call.1} parent=5 // pred_check_branch
        %1653 = sbr.rel (%p1651) target = $region104
      $region103: #{tpu_custom_call.1} parent=5 // pred_region
        %s1654 = ssub.s32 %s33, 2
        // Predicated region
        $region105: #{tpu_custom_call.1} parent=103 // pred_check
          %p1655 = pneg %p326
        $region106: #{tpu_custom_call.1} parent=103 // pred_check_branch
          %1657 = sbr.rel (%p1655) target = $region108
        $region107: #{tpu_custom_call.1} parent=103 // pred_region
          %s1658 = sand.u32 %s311, 1
          %s1659 = scalar_lea.sflag [#allocation8], %s1658
          %s1660 = sand.u32 %s311, 1
          %s1661 = smul.addr %s1660, 8
          %s1662 = scalar_lea.vmem [#allocation17], %s1661
          %1663 = dma.done %s1659, 128
        $region108: #{tpu_custom_call.1} parent=103 // pred_fallthru
          _
        // Predicated region
        $region109: #{tpu_custom_call.1} parent=103 // pred_check
          %p1664 = pneg %p354
        $region110: #{tpu_custom_call.1} parent=103 // pred_check_branch
          %1666 = sbr.rel (%p1664) target = $region112
        $region111: #{tpu_custom_call.1} parent=103 // pred_region
          %s1667 = sand.u32 %s339, 1
          %s1668 = scalar_lea.sflag [#allocation19], %s1667
          %s1669 = sand.u32 %s339, 1
          %s1670 = smul.addr %s1669, 32
          %s1671 = scalar_lea.vmem [#allocation18], %s1670
          %1672 = dma.done %s1668, 512
        $region112: #{tpu_custom_call.1} parent=103 // pred_fallthru
          _
      $region104: #{tpu_custom_call.1} parent=5 // pred_fallthru
        _
    $region6: #{tpu_custom_call.1} parent=1 // loop_footer
      %s37 = sadd.s32 1, %s33
    $region7: #{tpu_custom_call.1} parent=1 // loop_footer_branch
      %32 = sbr.rel target = $region3
    $region8: #{tpu_custom_call.1} parent=1 // loop_exit
      _
    %1673 = vsyncpa [#allocation7], 1
    %s1674 = scalar_lea.sflag [#allocation7], 1
    %1675 = vsyncpa %s1674, 1
    %1676 = vsyncpa [#allocation10], 1
    %s1677 = scalar_lea.sflag [#allocation10], 1
    %1678 = vsyncpa %s1677, 1
    %1679 = vsyncpa [#allocation13], 1
    %1680 = vsyncpa [#allocation16], 1
    %1681 = vsyncpa [#allocation8], 1
    %s1682 = scalar_lea.sflag [#allocation8], 1
    %1683 = vsyncpa %s1682, 1
    %1684 = vsyncpa [#allocation19], 1
    %s1685 = scalar_lea.sflag [#allocation19], 1
    %1686 = vsyncpa %s1685, 1

</llo_original>
